<compile_context>
chip_gen: v7x
topology: tpu7x:2x2x1
jax: 0.10.0
libtpu: 0.0.40
codegen_flags: <defaults>
</compile_context>

<pallas_src>
import functools
from typing import NamedTuple

import jax
import jax.numpy as jnp
from jax import lax
from jax.experimental import pallas as pl
from jax.experimental.pallas import tpu as pltpu

LANE = 128
_NEG = -1e30  # finite "minus infinity" for the lane mask (avoids inf*0 NaNs)


def _round_up(x, m):
    return (x + m - 1) // m * m


def _pad2(x, rows, cols):
    return jnp.pad(x, ((0, rows - x.shape[0]), (0, cols - x.shape[1])))


def _vmem_limit_bytes():
    """Per-chip VMEM budget: ~85% of physical, capped at 110 MiB (v5e/v6e)."""
    cap = 64 * 2**20
    try:
        info = pltpu.get_tpu_info()
        cap = int(getattr(info, "vmem_capacity_bytes", cap))
    except Exception:
        pass
    return int(min(cap * 0.85, 110 * 2**20))


def _choose_tiles(n, vmem_limit):
    """Row tile tm (multiple of 16), K tile tk (multiple of 128), padded N."""
    target_tm = 512 if vmem_limit >= 80 * 2**20 else 256   # v5e/v6e vs v7x
    half = max(pl.cdiv(n, 2), 16)   # >=2 row tiles when possible (v7x megacore)
    if half >= 128:
        tm = min(target_tm, (half // 128) * 128)
    else:
        tm = 16
        for cand in (64, 32, 16):
            if cand <= half:
                tm = cand
                break
    n_pad = _round_up(n, max(tm, 128))
    tk = 128
    for cand in (512, 256):
        if n_pad % cand == 0:
            tk = cand
            break
    return tm, tk, n_pad


class KeGCNv2Config(NamedTuple):
    n: int
    n_pad: int
    tm: int
    tk: int
    nk_tiles: int          # K tiles actually visited (dead padded tiles skipped)
    f_in: int
    f_h: int
    f_o: int
    out_dim: int
    fuse1: bool            # fuse x@W1 into layer-1 propagation
    fuse2: bool            # fuse h1@W2 into the head
    vmem_limit: int


def _cparams(cfg, two_d=True):
    sem = ("parallel", "arbitrary") if two_d else ("parallel",)
    return pltpu.CompilerParams(
        dimension_semantics=sem, vmem_limit_bytes=cfg.vmem_limit
    )


# ----------------------------- kernels --------------------------------------


def _proj_kernel(x_ref, w_ref, o_ref):
    # One row tile of X @ W (f32 accumulation), stored bf16 for the MXU stage.
    o_ref[...] = jnp.dot(
        x_ref[...], w_ref[...], preferred_element_type=jnp.float32
    ).astype(o_ref.dtype)


def _gcn1_kernel(a_ref, p_ref, w_ref, b_ref, o_ref, acc_ref, *, fused):
    # h1_tile = relu( (sum_k A[i,k] @ panel[k]) [@ W1] + b1 ), K-tiled.
    k = pl.program_id(1)

    @pl.when(k == 0)
    def _():
        acc_ref[...] = jnp.zeros_like(acc_ref)

    acc_ref[...] += jnp.dot(
        a_ref[...], p_ref[...], preferred_element_type=jnp.float32
    )

    @pl.when(k == pl.num_programs(1) - 1)
    def _():
        h = acc_ref[...]
        if fused:  # static Python flag: apply the layer weight in the epilogue
            h = jnp.dot(
                h.astype(jnp.bfloat16), w_ref[...],
                preferred_element_type=jnp.float32,
            )
        h = jnp.maximum(h + b_ref[0:1, :], 0.0)
        o_ref[...] = h.astype(o_ref.dtype)


def _head_kernel(a_ref, p_ref, w2_ref, hb_ref, we1_ref, we2_ref, o_ref, acc_ref,
                 *, out_dim, fused):
    # z = (A @ panel) [@ W2] + b2 ; logp = log_softmax(z) ;
    # out = logp + Lin2(relu(Lin1(logp)))            -- all in the last K step.
    k = pl.program_id(1)

    @pl.when(k == 0)
    def _():
        acc_ref[...] = jnp.zeros_like(acc_ref)

    acc_ref[...] += jnp.dot(
        a_ref[...], p_ref[...], preferred_element_type=jnp.float32
    )

    @pl.when(k == pl.num_programs(1) - 1)
    def _():
        z = acc_ref[...]
        if fused:
            z = jnp.dot(
                z.astype(jnp.bfloat16), w2_ref[...],
                preferred_element_type=jnp.float32,
            )
        z = z + hb_ref[0:1, :]                                   # b2

        # Masked (lane-padded) log-softmax over the real out_dim lanes.
        lane = lax.broadcasted_iota(jnp.int32, z.shape, 1)
        valid = lane < out_dim
        zm = jnp.where(valid, z, _NEG)
        m = jnp.max(zm, axis=-1, keepdims=True)
        s = zm - m
        p = jnp.where(valid, jnp.exp(s), 0.0)
        lse = jnp.log(jnp.sum(p, axis=-1, keepdims=True))
        logp = s - lse

        # Enhance MLP (Linear -> ReLU -> Linear); bf16 MXU, f32 accumulation.
        logp_v = jnp.where(valid, logp, 0.0)
        e1 = jnp.dot(logp_v.astype(jnp.bfloat16), we1_ref[...],
                     preferred_element_type=jnp.float32) + hb_ref[1:2, :]  # be1
        e1 = jnp.maximum(e1, 0.0)
        e2 = jnp.dot(e1.astype(jnp.bfloat16), we2_ref[...],
                     preferred_element_type=jnp.float32) + hb_ref[2:3, :]  # be2

        o_ref[...] = jnp.where(valid, logp + e2, 0.0)


# --------------------------- pallas_call wrappers ----------------------------


def _proj(x, w, cfg):
    # Project-first fallback (only when padded in-width > padded out-width).
    n_pad, kdim = x.shape
    f = w.shape[1]
    return pl.pallas_call(
        _proj_kernel,
        out_shape=jax.ShapeDtypeStruct((n_pad, f), jnp.bfloat16),
        grid=(n_pad // cfg.tm,),
        in_specs=[pl.BlockSpec((cfg.tm, kdim), lambda i: (i, 0)),
                  pl.BlockSpec((kdim, f), lambda i: (0, 0))],
        out_specs=pl.BlockSpec((cfg.tm, f), lambda i: (i, 0)),
        compiler_params=_cparams(cfg, two_d=False),
    )(x, w)


def _gcn1(a, panel, w, b, cfg, fused):
    tm, tk = cfg.tm, cfg.tk
    f_p = panel.shape[1]
    f_h = w.shape[1]
    kern = functools.partial(_gcn1_kernel, fused=fused)
    return pl.pallas_call(
        kern,
        out_shape=jax.ShapeDtypeStruct((cfg.n_pad, f_h), jnp.bfloat16),
        grid=(cfg.n_pad // tm, cfg.nk_tiles),
        in_specs=[
            pl.BlockSpec((tm, tk), lambda i, k: (i, k)),     # A tile
            pl.BlockSpec((tk, f_p), lambda i, k: (k, 0)),    # panel K slab
            pl.BlockSpec(w.shape, lambda i, k: (0, 0)),      # W1   (resident)
            pl.BlockSpec(b.shape, lambda i, k: (0, 0)),      # b1   (resident)
        ],
        out_specs=pl.BlockSpec((tm, f_h), lambda i, k: (i, 0)),
        scratch_shapes=[pltpu.VMEM((tm, f_p), jnp.float32)],
        compiler_params=_cparams(cfg),
    )(a, panel, w, b)


def _head(a, panel, w2, head_b, we1, we2, cfg, fused):
    tm, tk = cfg.tm, cfg.tk
    f_p = panel.shape[1]
    f_o = we1.shape[0]
    kern = functools.partial(_head_kernel, out_dim=cfg.out_dim, fused=fused)
    return pl.pallas_call(
        kern,
        out_shape=jax.ShapeDtypeStruct((cfg.n_pad, f_o), jnp.float32),
        grid=(cfg.n_pad // tm, cfg.nk_tiles),
        in_specs=[
            pl.BlockSpec((tm, tk), lambda i, k: (i, k)),       # A tile
            pl.BlockSpec((tk, f_p), lambda i, k: (k, 0)),      # panel K slab
            pl.BlockSpec(w2.shape, lambda i, k: (0, 0)),       # W2       (resident)
            pl.BlockSpec(head_b.shape, lambda i, k: (0, 0)),   # b2/be1/be2
            pl.BlockSpec(we1.shape, lambda i, k: (0, 0)),      # We1      (resident)
            pl.BlockSpec(we2.shape, lambda i, k: (0, 0)),      # We2      (resident)
        ],
        out_specs=pl.BlockSpec((tm, f_o), lambda i, k: (i, 0)),
        scratch_shapes=[pltpu.VMEM((tm, f_p), jnp.float32)],
        compiler_params=_cparams(cfg),
    )(a, panel, w2, head_b, we1, we2)


# ------------------------------ model glue -----------------------------------


def build_norm_adj(edge_index, num_nodes):
    """Dense D^{-1/2}(A + I)D^{-1/2} with PyG-style GCN normalization.

    Multi-edges accumulate (scatter-add); a self-loop of weight 1 is added only
    for nodes that don't already have one. Built ONCE per static graph.
    """
    src = edge_index[0]
    dst = edge_index[1]
    adj = jnp.zeros((num_nodes, num_nodes), jnp.float32)
    adj = adj.at[dst, src].add(1.0)            # A[target, source] += 1
    diag = jnp.diagonal(adj)
    adj = adj + jnp.diag(jnp.where(diag > 0.0, 0.0, 1.0))
    deg = jnp.sum(adj, axis=1)
    dinv = jnp.where(deg > 0.0, lax.rsqrt(deg), 0.0)
    return adj * dinv[:, None] * dinv[None, :]


def prepare_kegcn_v2(a_hat, params):
    """One-time prep: tile config + padded/bf16-cast static operands (cached)."""
    w1, b1, w2, b2, we1, be1, we2, be2 = params
    n = a_hat.shape[0]
    in_dim, hidden = w1.shape
    out_dim = w2.shape[1]

    vmem_limit = _vmem_limit_bytes()
    tm, tk, n_pad = _choose_tiles(n, vmem_limit)
    nk_tiles = pl.cdiv(_round_up(n, tk), tk)   # skip fully-padded K tiles
    f_in = _round_up(in_dim, LANE)
    f_h = _round_up(hidden, LANE)
    f_o = _round_up(out_dim, LANE)

    cfg = KeGCNv2Config(
        n=n, n_pad=n_pad, tm=tm, tk=tk, nk_tiles=nk_tiles,
        f_in=f_in, f_h=f_h, f_o=f_o, out_dim=out_dim,
        fuse1=(f_in <= f_h), fuse2=(f_h <= f_o), vmem_limit=vmem_limit,
    )

    a_p = _pad2(a_hat.astype(jnp.float32), n_pad, n_pad).astype(jnp.bfloat16)
    w1_p = _pad2(w1, f_in, f_h).astype(jnp.bfloat16)
    w2_p = _pad2(w2, f_h, f_o).astype(jnp.bfloat16)
    we1_p = _pad2(we1, f_o, f_o).astype(jnp.bfloat16)
    we2_p = _pad2(we2, f_o, f_o).astype(jnp.bfloat16)
    b1_p = jnp.zeros((8, f_h), jnp.float32).at[0, :hidden].set(b1)
    head_b = (jnp.zeros((8, f_o), jnp.float32)
              .at[0, :out_dim].set(b2)
              .at[1, :out_dim].set(be1)
              .at[2, :out_dim].set(be2))

    ops = (a_p, w1_p, b1_p, w2_p, head_b, we1_p, we2_p)
    return cfg, ops


def kegcn_v2_forward(x, ops, cfg):
    a_p, w1_p, b1_p, w2_p, head_b, we1_p, we2_p = ops
    # Only x is padded / cast per call; everything static was cached in `ops`.
    x_p = _pad2(x, cfg.n_pad, cfg.f_in).astype(jnp.bfloat16)

    # Layer 1: relu(A @ X @ W1 + b1) -- fused unless projecting first is cheaper.
    if cfg.fuse1:
        h1 = _gcn1(a_p, x_p, w1_p, b1_p, cfg, fused=True)
    else:
        xw1 = _proj(x_p, w1_p, cfg)
        h1 = _gcn1(a_p, xw1, w1_p, b1_p, cfg, fused=False)

    # Layer 2 + log-softmax + enhance residual, same fusion guard.
    if cfg.fuse2:
        out = _head(a_p, h1, w2_p, head_b, we1_p, we2_p, cfg, fused=True)
    else:
        hw2 = _proj(h1, w2_p, cfg)
        out = _head(a_p, hw2, w2_p, head_b, we1_p, we2_p, cfg, fused=False)

    return out[:cfg.n, :cfg.out_dim]


def kegcn_v2_reference(x, a_hat, params):
    """Pure-JAX f32 reference (for tolerance validation of the bf16 kernels)."""
    w1, b1, w2, b2, we1, be1, we2, be2 = params
    h1 = jax.nn.relu(a_hat @ (x @ w1) + b1)
    z = a_hat @ (h1 @ w2) + b2
    logp = jax.nn.log_softmax(z, axis=1)
    e = jnp.maximum(logp @ we1 + be1, 0.0) @ we2 + be2
    return logp + e


def init_params(key, in_dim, hidden_dim, out_dim):
    ks = jax.random.split(key, 6)

    def glorot(k, fan_in, fan_out):
        scale = jnp.sqrt(6.0 / (fan_in + fan_out))
        return jax.random.uniform(k, (fan_in, fan_out), jnp.float32, -scale, scale)

    w1 = glorot(ks[0], in_dim, hidden_dim)
    b1 = jnp.zeros((hidden_dim,), jnp.float32)
    w2 = glorot(ks[1], hidden_dim, out_dim)
    b2 = jnp.zeros((out_dim,), jnp.float32)
    # torch nn.Linear stores [out, in]; we keep the already-transposed [in, out].
    we1 = glorot(ks[2], out_dim, out_dim)
    be1 = jax.random.uniform(ks[3], (out_dim,), jnp.float32, -0.1, 0.1)
    we2 = glorot(ks[4], out_dim, out_dim)
    be2 = jax.random.uniform(ks[5], (out_dim,), jnp.float32, -0.1, 0.1)
    return (w1, b1, w2, b2, we1, be1, we2, be2)


if __name__ == "__main__":
    N, IN_DIM, HIDDEN_DIM, OUT_DIM, E = 64, 16, 32, 8, 128

    key = jax.random.PRNGKey(0)
    kx, ke, kp = jax.random.split(key, 3)

    x = jax.random.normal(kx, (N, IN_DIM), jnp.float32)

    # Deterministic random graph, made undirected (both directions present).
    src = jax.random.randint(ke, (E,), 0, N, dtype=jnp.int32)
    dst = jax.random.randint(jax.random.fold_in(ke, 1), (E,), 0, N, dtype=jnp.int32)
    edge_index = jnp.stack(
        [jnp.concatenate([src, dst]), jnp.concatenate([dst, src])], axis=0
    )

    params = init_params(kp, IN_DIM, HIDDEN_DIM, OUT_DIM)

    # Static-graph / static-weight prep done ONCE and cached across calls.
    a_hat = build_norm_adj(edge_index, N)
    cfg, ops = prepare_kegcn_v2(a_hat, params)
    ops = jax.block_until_ready(ops)

    fwd = jax.jit(functools.partial(kegcn_v2_forward, cfg=cfg))
    out = fwd(x, ops)
    out = jax.block_until_ready(out)

    assert out.shape == (N, OUT_DIM)
    assert bool(jnp.all(jnp.isfinite(out)))

    # bf16 MXU operands -> tolerance check (not exact) vs. f32 reference.
    ref = kegcn_v2_reference(x, a_hat, params)
    err = float(jnp.max(jnp.abs(out - ref)))
    assert err < 2e-1, f"max |pallas - reference| = {err}"

    print("KERNEL_OK")
</pallas_src>

<mosaic_0001>
module attributes {stable_mosaic.version = 11 : i64} {
  func.func @_gcn1_kernel(%arg0: i32, %arg1: i32, %arg2: memref<32x128xbf16, #tpu.memory_space<vmem>>, %arg3: memref<128x128xbf16, #tpu.memory_space<vmem>>, %arg4: memref<128x128xbf16, #tpu.memory_space<vmem>>, %arg5: memref<8x128xf32, #tpu.memory_space<vmem>>, %arg6: memref<32x128xbf16, #tpu.memory_space<vmem>>, %arg7: memref<32x128xf32, #tpu.memory_space<vmem>>) attributes {dimension_semantics = [#tpu.dimension_semantics<parallel>, #tpu.dimension_semantics<arbitrary>], iteration_bounds = array<i64: 4, 1>, scalar_prefetch = 0 : i64, scratch_operands = 1 : i64, tpu.core_type = #tpu.core_type<tc>, window_params = [{transform_indices = @transform_0, window_bounds = array<i64: 32, 128>}, {transform_indices = @transform_1, window_bounds = array<i64: 128, 128>}, {pipeline_mode = #tpu.pipeline_mode<synchronous>, transform_indices = @transform_2, window_bounds = array<i64: 128, 128>}, {pipeline_mode = #tpu.pipeline_mode<synchronous>, transform_indices = @transform_3, window_bounds = array<i64: 8, 128>}, {transform_indices = @transform_4, window_bounds = array<i64: 32, 128>}]} {
    %c0_i32 = arith.constant 0 : i32
    %0 = arith.cmpi eq, %arg1, %c0_i32 : i32
    %1 = arith.extui %0 : i1 to i32
    %c0_i32_0 = arith.constant 0 : i32
    %2 = arith.cmpi ne, %1, %c0_i32_0 : i32
    scf.if %2 {
      %cst_10 = arith.constant 0.000000e+00 : f32
      %12 = vector.broadcast %cst_10 : f32 to vector<32x128xf32>
      %c0_11 = arith.constant 0 : index
      %c0_12 = arith.constant 0 : index
      %13 = vector.load %arg7[%c0_11, %c0_12] : memref<32x128xf32, #tpu.memory_space<vmem>>, vector<32x128xf32>
      tpu.vector_store %arg7[%c0_11, %c0_12], %12 {strides = array<i32>} : memref<32x128xf32, #tpu.memory_space<vmem>>, vector<32x128xf32>,
    } else {
    }
    %c0 = arith.constant 0 : index
    %c0_1 = arith.constant 0 : index
    %3 = vector.load %arg7[%c0, %c0_1] : memref<32x128xf32, #tpu.memory_space<vmem>>, vector<32x128xf32>
    %c0_2 = arith.constant 0 : index
    %c0_3 = arith.constant 0 : index
    %4 = vector.load %arg2[%c0_2, %c0_3] : memref<32x128xbf16, #tpu.memory_space<vmem>>, vector<32x128xbf16>
    %c0_4 = arith.constant 0 : index
    %c0_5 = arith.constant 0 : index
    %5 = vector.load %arg3[%c0_4, %c0_5] : memref<128x128xbf16, #tpu.memory_space<vmem>>, vector<128x128xbf16>
    %cst = arith.constant dense<0.000000e+00> : vector<32x128xf32>
    %6 = tpu.matmul %4, %5, %cst {dimension_numbers = #tpu.dot_dimension_numbers<[1], [0], [0], [1], [0, 0, 1, 1], [], []>} : vector<32x128xbf16>, vector<128x128xbf16>, vector<32x128xf32> -> vector<32x128xf32>
    %7 = arith.addf %3, %6 : vector<32x128xf32>
    %c0_6 = arith.constant 0 : index
    %c0_7 = arith.constant 0 : index
    %8 = vector.load %arg7[%c0_6, %c0_7] : memref<32x128xf32, #tpu.memory_space<vmem>>, vector<32x128xf32>
    tpu.vector_store %arg7[%c0_6, %c0_7], %7 {strides = array<i32>} : memref<32x128xf32, #tpu.memory_space<vmem>>, vector<32x128xf32>,
    %c0_i32_8 = arith.constant 0 : i32
    %9 = arith.cmpi eq, %arg1, %c0_i32_8 : i32
    %10 = arith.extui %9 : i1 to i32
    %c0_i32_9 = arith.constant 0 : i32
    %11 = arith.cmpi ne, %10, %c0_i32_9 : i32
    scf.if %11 {
      %c0_10 = arith.constant 0 : index
      %c0_11 = arith.constant 0 : index
      %12 = vector.load %arg7[%c0_10, %c0_11] : memref<32x128xf32, #tpu.memory_space<vmem>>, vector<32x128xf32>
      %13 = arith.truncf %12 : vector<32x128xf32> to vector<32x128xbf16>
      %c0_12 = arith.constant 0 : index
      %c0_13 = arith.constant 0 : index
      %14 = vector.load %arg4[%c0_12, %c0_13] : memref<128x128xbf16, #tpu.memory_space<vmem>>, vector<128x128xbf16>
      %cst_14 = arith.constant dense<0.000000e+00> : vector<32x128xf32>
      %15 = tpu.matmul %13, %14, %cst_14 {dimension_numbers = #tpu.dot_dimension_numbers<[1], [0], [0], [1], [0, 0, 1, 1], [], []>} : vector<32x128xbf16>, vector<128x128xbf16>, vector<32x128xf32> -> vector<32x128xf32>
      %c0_15 = arith.constant 0 : index
      %c0_16 = arith.constant 0 : index
      %16 = vector.load %arg5[%c0_15, %c0_16] : memref<8x128xf32, #tpu.memory_space<vmem>>, vector<1x128xf32>
      %17 = vector.broadcast %16 : vector<1x128xf32> to vector<32x128xf32>
      %18 = arith.addf %15, %17 : vector<32x128xf32>
      %cst_17 = arith.constant 0.000000e+00 : f32
      %19 = vector.broadcast %cst_17 : f32 to vector<32x128xf32>
      %20 = arith.maximumf %18, %19 : vector<32x128xf32>
      %21 = arith.truncf %20 : vector<32x128xf32> to vector<32x128xbf16>
      %c0_18 = arith.constant 0 : index
      %c0_19 = arith.constant 0 : index
      %22 = vector.load %arg6[%c0_18, %c0_19] : memref<32x128xbf16, #tpu.memory_space<vmem>>, vector<32x128xbf16>
      tpu.vector_store %arg6[%c0_18, %c0_19], %21 {strides = array<i32>} : memref<32x128xbf16, #tpu.memory_space<vmem>>, vector<32x128xbf16>,
    } else {
    }
    return
  }
  func.func @transform_0(%arg0: i32, %arg1: i32) -> (i32, i32) {
    %c0_i32 = arith.constant 0 : i32
    return %arg0, %arg1 : i32, i32
  }
  func.func @transform_1(%arg0: i32, %arg1: i32) -> (i32, i32) {
    %c0_i32 = arith.constant 0 : i32
    %c0_i32_0 = arith.constant 0 : i32
    return %arg1, %c0_i32 : i32, i32
  }
  func.func @transform_2(%arg0: i32, %arg1: i32) -> (i32, i32) {
    %c0_i32 = arith.constant 0 : i32
    %c0_i32_0 = arith.constant 0 : i32
    %c0_i32_1 = arith.constant 0 : i32
    return %c0_i32, %c0_i32_0 : i32, i32
  }
  func.func @transform_3(%arg0: i32, %arg1: i32) -> (i32, i32) {
    %c0_i32 = arith.constant 0 : i32
    %c0_i32_0 = arith.constant 0 : i32
    %c0_i32_1 = arith.constant 0 : i32
    return %c0_i32, %c0_i32_0 : i32, i32
  }
  func.func @transform_4(%arg0: i32, %arg1: i32) -> (i32, i32) {
    %c0_i32 = arith.constant 0 : i32
    %c0_i32_0 = arith.constant 0 : i32
    return %arg0, %c0_i32 : i32, i32
  }
}

module attributes {stable_mosaic.version = 11 : i64} {
  func.func @_head_kernel(%arg0: i32, %arg1: i32, %arg2: memref<32x128xbf16, #tpu.memory_space<vmem>>, %arg3: memref<128x128xbf16, #tpu.memory_space<vmem>>, %arg4: memref<128x128xbf16, #tpu.memory_space<vmem>>, %arg5: memref<8x128xf32, #tpu.memory_space<vmem>>, %arg6: memref<128x128xbf16, #tpu.memory_space<vmem>>, %arg7: memref<128x128xbf16, #tpu.memory_space<vmem>>, %arg8: memref<32x128xf32, #tpu.memory_space<vmem>>, %arg9: memref<32x128xf32, #tpu.memory_space<vmem>>) attributes {dimension_semantics = [#tpu.dimension_semantics<parallel>, #tpu.dimension_semantics<arbitrary>], iteration_bounds = array<i64: 4, 1>, scalar_prefetch = 0 : i64, scratch_operands = 1 : i64, tpu.core_type = #tpu.core_type<tc>, window_params = [{transform_indices = @transform_0, window_bounds = array<i64: 32, 128>}, {transform_indices = @transform_1, window_bounds = array<i64: 128, 128>}, {pipeline_mode = #tpu.pipeline_mode<synchronous>, transform_indices = @transform_2, window_bounds = array<i64: 128, 128>}, {pipeline_mode = #tpu.pipeline_mode<synchronous>, transform_indices = @transform_3, window_bounds = array<i64: 8, 128>}, {pipeline_mode = #tpu.pipeline_mode<synchronous>, transform_indices = @transform_4, window_bounds = array<i64: 128, 128>}, {pipeline_mode = #tpu.pipeline_mode<synchronous>, transform_indices = @transform_5, window_bounds = array<i64: 128, 128>}, {transform_indices = @transform_6, window_bounds = array<i64: 32, 128>}]} {
    %c0_i32 = arith.constant 0 : i32
    %0 = arith.cmpi eq, %arg1, %c0_i32 : i32
    %1 = arith.extui %0 : i1 to i32
    %c0_i32_0 = arith.constant 0 : i32
    %2 = arith.cmpi ne, %1, %c0_i32_0 : i32
    scf.if %2 {
      %cst_10 = arith.constant 0.000000e+00 : f32
      %12 = vector.broadcast %cst_10 : f32 to vector<32x128xf32>
      %c0_11 = arith.constant 0 : index
      %c0_12 = arith.constant 0 : index
      %13 = vector.load %arg9[%c0_11, %c0_12] : memref<32x128xf32, #tpu.memory_space<vmem>>, vector<32x128xf32>
      tpu.vector_store %arg9[%c0_11, %c0_12], %12 {strides = array<i32>} : memref<32x128xf32, #tpu.memory_space<vmem>>, vector<32x128xf32>,
    } else {
    }
    %c0 = arith.constant 0 : index
    %c0_1 = arith.constant 0 : index
    %3 = vector.load %arg9[%c0, %c0_1] : memref<32x128xf32, #tpu.memory_space<vmem>>, vector<32x128xf32>
    %c0_2 = arith.constant 0 : index
    %c0_3 = arith.constant 0 : index
    %4 = vector.load %arg2[%c0_2, %c0_3] : memref<32x128xbf16, #tpu.memory_space<vmem>>, vector<32x128xbf16>
    %c0_4 = arith.constant 0 : index
    %c0_5 = arith.constant 0 : index
    %5 = vector.load %arg3[%c0_4, %c0_5] : memref<128x128xbf16, #tpu.memory_space<vmem>>, vector<128x128xbf16>
    %cst = arith.constant dense<0.000000e+00> : vector<32x128xf32>
    %6 = tpu.matmul %4, %5, %cst {dimension_numbers = #tpu.dot_dimension_numbers<[1], [0], [0], [1], [0, 0, 1, 1], [], []>} : vector<32x128xbf16>, vector<128x128xbf16>, vector<32x128xf32> -> vector<32x128xf32>
    %7 = arith.addf %3, %6 : vector<32x128xf32>
    %c0_6 = arith.constant 0 : index
    %c0_7 = arith.constant 0 : index
    %8 = vector.load %arg9[%c0_6, %c0_7] : memref<32x128xf32, #tpu.memory_space<vmem>>, vector<32x128xf32>
    tpu.vector_store %arg9[%c0_6, %c0_7], %7 {strides = array<i32>} : memref<32x128xf32, #tpu.memory_space<vmem>>, vector<32x128xf32>,
    %c0_i32_8 = arith.constant 0 : i32
    %9 = arith.cmpi eq, %arg1, %c0_i32_8 : i32
    %10 = arith.extui %9 : i1 to i32
    %c0_i32_9 = arith.constant 0 : i32
    %11 = arith.cmpi ne, %10, %c0_i32_9 : i32
    scf.if %11 {
      %c0_10 = arith.constant 0 : index
      %c0_11 = arith.constant 0 : index
      %12 = vector.load %arg9[%c0_10, %c0_11] : memref<32x128xf32, #tpu.memory_space<vmem>>, vector<32x128xf32>
      %13 = arith.truncf %12 : vector<32x128xf32> to vector<32x128xbf16>
      %c0_12 = arith.constant 0 : index
      %c0_13 = arith.constant 0 : index
      %14 = vector.load %arg4[%c0_12, %c0_13] : memref<128x128xbf16, #tpu.memory_space<vmem>>, vector<128x128xbf16>
      %cst_14 = arith.constant dense<0.000000e+00> : vector<32x128xf32>
      %15 = tpu.matmul %13, %14, %cst_14 {dimension_numbers = #tpu.dot_dimension_numbers<[1], [0], [0], [1], [0, 0, 1, 1], [], []>} : vector<32x128xbf16>, vector<128x128xbf16>, vector<32x128xf32> -> vector<32x128xf32>
      %c0_15 = arith.constant 0 : index
      %c0_16 = arith.constant 0 : index
      %16 = vector.load %arg5[%c0_15, %c0_16] : memref<8x128xf32, #tpu.memory_space<vmem>>, vector<1x128xf32>
      %17 = vector.broadcast %16 : vector<1x128xf32> to vector<32x128xf32>
      %18 = arith.addf %15, %17 : vector<32x128xf32>
      %19 = tpu.iota {dimensions = array<i32: 1>} : vector<32x128xi32>
      %c8_i32 = arith.constant 8 : i32
      %20 = vector.broadcast %c8_i32 : i32 to vector<32x128xi32>
      %21 = arith.cmpi slt, %19, %20 : vector<32x128xi32>
      %cst_17 = arith.constant -1.000000e+30 : f32
      %22 = vector.broadcast %cst_17 : f32 to vector<32x128xf32>
      %23 = arith.select %21, %18, %22 : vector<32x128xi1>, vector<32x128xf32>
      %cst_18 = arith.constant dense<0xFF800000> : vector<32xf32>
      %24 = vector.multi_reduction <maximumf>, %23, %cst_18 [1] : vector<32x128xf32> to vector<32xf32>
      %25 = vector.shape_cast %24 : vector<32xf32> to vector<32x1xf32>
      %26 = vector.broadcast %25 : vector<32x1xf32> to vector<32x128xf32>
      %27 = arith.subf %23, %26 : vector<32x128xf32>
      %28 = math.exp %27 : vector<32x128xf32>
      %cst_19 = arith.constant 0.000000e+00 : f32
      %29 = vector.broadcast %cst_19 : f32 to vector<32x128xf32>
      %30 = arith.select %21, %28, %29 : vector<32x128xi1>, vector<32x128xf32>
      %cst_20 = arith.constant dense<0.000000e+00> : vector<32xf32>
      %31 = vector.multi_reduction <add>, %30, %cst_20 [1] : vector<32x128xf32> to vector<32xf32>
      %32 = vector.shape_cast %31 : vector<32xf32> to vector<32x1xf32>
      %33 = math.log %32 : vector<32x1xf32>
      %34 = vector.broadcast %33 : vector<32x1xf32> to vector<32x128xf32>
      %35 = arith.subf %27, %34 : vector<32x128xf32>
      %cst_21 = arith.constant 0.000000e+00 : f32
      %36 = vector.broadcast %cst_21 : f32 to vector<32x128xf32>
      %37 = arith.select %21, %35, %36 : vector<32x128xi1>, vector<32x128xf32>
      %38 = arith.truncf %37 : vector<32x128xf32> to vector<32x128xbf16>
      %c0_22 = arith.constant 0 : index
      %c0_23 = arith.constant 0 : index
      %39 = vector.load %arg6[%c0_22, %c0_23] : memref<128x128xbf16, #tpu.memory_space<vmem>>, vector<128x128xbf16>
      %cst_24 = arith.constant dense<0.000000e+00> : vector<32x128xf32>
      %40 = tpu.matmul %38, %39, %cst_24 {dimension_numbers = #tpu.dot_dimension_numbers<[1], [0], [0], [1], [0, 0, 1, 1], [], []>} : vector<32x128xbf16>, vector<128x128xbf16>, vector<32x128xf32> -> vector<32x128xf32>
      %c1 = arith.constant 1 : index
      %c0_25 = arith.constant 0 : index
      %41 = vector.load %arg5[%c1, %c0_25] : memref<8x128xf32, #tpu.memory_space<vmem>>, vector<1x128xf32>
      %42 = vector.broadcast %41 : vector<1x128xf32> to vector<32x128xf32>
      %43 = arith.addf %40, %42 : vector<32x128xf32>
      %cst_26 = arith.constant 0.000000e+00 : f32
      %44 = vector.broadcast %cst_26 : f32 to vector<32x128xf32>
      %45 = arith.maximumf %43, %44 : vector<32x128xf32>
      %46 = arith.truncf %45 : vector<32x128xf32> to vector<32x128xbf16>
      %c0_27 = arith.constant 0 : index
      %c0_28 = arith.constant 0 : index
      %47 = vector.load %arg7[%c0_27, %c0_28] : memref<128x128xbf16, #tpu.memory_space<vmem>>, vector<128x128xbf16>
      %cst_29 = arith.constant dense<0.000000e+00> : vector<32x128xf32>
      %48 = tpu.matmul %46, %47, %cst_29 {dimension_numbers = #tpu.dot_dimension_numbers<[1], [0], [0], [1], [0, 0, 1, 1], [], []>} : vector<32x128xbf16>, vector<128x128xbf16>, vector<32x128xf32> -> vector<32x128xf32>
      %c2 = arith.constant 2 : index
      %c0_30 = arith.constant 0 : index
      %49 = vector.load %arg5[%c2, %c0_30] : memref<8x128xf32, #tpu.memory_space<vmem>>, vector<1x128xf32>
      %50 = vector.broadcast %49 : vector<1x128xf32> to vector<32x128xf32>
      %51 = arith.addf %48, %50 : vector<32x128xf32>
      %52 = arith.addf %35, %51 : vector<32x128xf32>
      %cst_31 = arith.constant 0.000000e+00 : f32
      %53 = vector.broadcast %cst_31 : f32 to vector<32x128xf32>
      %54 = arith.select %21, %52, %53 : vector<32x128xi1>, vector<32x128xf32>
      %c0_32 = arith.constant 0 : index
      %c0_33 = arith.constant 0 : index
      %55 = vector.load %arg8[%c0_32, %c0_33] : memref<32x128xf32, #tpu.memory_space<vmem>>, vector<32x128xf32>
      tpu.vector_store %arg8[%c0_32, %c0_33], %54 {strides = array<i32>} : memref<32x128xf32, #tpu.memory_space<vmem>>, vector<32x128xf32>,
    } else {
    }
    return
  }
  func.func @transform_0(%arg0: i32, %arg1: i32) -> (i32, i32) {
    %c0_i32 = arith.constant 0 : i32
    return %arg0, %arg1 : i32, i32
  }
  func.func @transform_1(%arg0: i32, %arg1: i32) -> (i32, i32) {
    %c0_i32 = arith.constant 0 : i32
    %c0_i32_0 = arith.constant 0 : i32
    return %arg1, %c0_i32 : i32, i32
  }
  func.func @transform_2(%arg0: i32, %arg1: i32) -> (i32, i32) {
    %c0_i32 = arith.constant 0 : i32
    %c0_i32_0 = arith.constant 0 : i32
    %c0_i32_1 = arith.constant 0 : i32
    return %c0_i32, %c0_i32_0 : i32, i32
  }
  func.func @transform_3(%arg0: i32, %arg1: i32) -> (i32, i32) {
    %c0_i32 = arith.constant 0 : i32
    %c0_i32_0 = arith.constant 0 : i32
    %c0_i32_1 = arith.constant 0 : i32
    return %c0_i32, %c0_i32_0 : i32, i32
  }
  func.func @transform_4(%arg0: i32, %arg1: i32) -> (i32, i32) {
    %c0_i32 = arith.constant 0 : i32
    %c0_i32_0 = arith.constant 0 : i32
    %c0_i32_1 = arith.constant 0 : i32
    return %c0_i32, %c0_i32_0 : i32, i32
  }
  func.func @transform_5(%arg0: i32, %arg1: i32) -> (i32, i32) {
    %c0_i32 = arith.constant 0 : i32
    %c0_i32_0 = arith.constant 0 : i32
    %c0_i32_1 = arith.constant 0 : i32
    return %c0_i32, %c0_i32_0 : i32, i32
  }
  func.func @transform_6(%arg0: i32, %arg1: i32) -> (i32, i32) {
    %c0_i32 = arith.constant 0 : i32
    %c0_i32_0 = arith.constant 0 : i32
    return %arg0, %c0_i32 : i32, i32
  }
}

</mosaic_0001>

<llo_original>
// kernel: kegcn_v2_forward.2
$region0: #{kegcn_v2_forward.2}
  #allocation0 [shape = 'u32[]', space=smem, size = 0x4, offset = 0x4, fixed_abs, tag = 'smem constant byte address 0x4 - core index']
  #allocation1 [shape = 'u32[144,128]{1,0:T(1,128)}', space=vmem, size = 0x12000, scoped, tag = 'internal scratch']
  #allocation2 [shape = 'f32[32,128]{1,0:T(8,128)}', space=vmem, size = 0x4000, scoped, tag = 'scratch operand']
  %s0 = inlined_call_operand.vmem [shape: bf16[128,128], index: 0, kind: input, shape index: {}]
  %s1 = inlined_call_operand.vmem [shape: bf16[128,128], index: 1, kind: input, shape index: {}]
  %s2 = inlined_call_operand.vmem [shape: bf16[128,128], index: 2, kind: input, shape index: {}]
  %s3 = inlined_call_operand.vmem [shape: f32[8,128], index: 3, kind: input, shape index: {}]
  %s4 = inlined_call_operand.vmem [shape: bf16[128,128], index: 4, kind: output, shape index: {}]
  %s5 = sld [smem:[#allocation0]]
  $region57: #{kegcn_v2_forward.2} parent=0
    _
  %s7 = ssub.s32 1, %s5
  %s8 = scalar_select 0, %s7, %s5
  loop: start=0, step=1, limit=6
  $region2: #{kegcn_v2_forward.2} parent=0 // loop_pre_header
    _
  $region3: #{kegcn_v2_forward.2} parent=0 // loop_header
    %s10 = sphi 0, %s14
    %p11 = scmp.ge.s32.totalorder %s10, 6
    %s17 = sphi 0, %s29
    %s18 = sphi 0, %s25
    %s19 = sphi 0, %s17
    %s20 = sphi 0, %s18
    %s21 = sphi 0, %s19
    %s22 = sphi 0, %s20
    %s34 = sphi 0, %s36
    %s37 = sphi 0, %s34
    %s38 = sphi 0, %s37
    %s54 = sphi 0, %s38
    %s60 = sphi 0, %s62
    %s63 = sphi 0, %s60
    %s64 = sphi 0, %s63
    %s80 = sphi 0, %s64
    %s84 = sphi 0, %s84
    %s86 = sphi 0, %s84
    %s87 = sphi 0, %s86
    %s101 = sphi 0, %s87
    %s105 = sphi 0, %s105
    %s107 = sphi 0, %s105
    %s108 = sphi 0, %s107
    %s122 = sphi 0, %s108
    %s128 = sphi 0, %s130
    %s131 = sphi 0, %s128
    %s132 = sphi 0, %s131
    %s148 = sphi 0, %s132
  $region4: #{kegcn_v2_forward.2} parent=0 // loop_header_branch
    %13 = sbr.rel (%p11) target = $region8
  $region5: #{kegcn_v2_forward.2} parent=0 // loop_body
    %s15 = ssub.s32 %s10, 1
    %s16 = ssub.s32 %s10, 2
    %s23 = sadd.s32 1, %s18
    %p24 = scmp.ge.s32.totalorder %s23, 1
    %s25 = scalar_select %p24, 0, %s23
    %s26 = sadd.s32 1, %s17
    %s27 = scalar_select %p24, %s26, %s17
    %p28 = scmp.ge.s32.totalorder %s27, 4
    %s29 = scalar_select %p28, 0, %s27
    %s30 = ssub.s32 %s17, %s29
    %s31 = ssub.s32 %s18, %s25
    %s32 = sor.u32 %s30, %s31
    %p33 = scmp.eq.s32.totalorder %s32, 0
    %s35 = sadd.s32 %s34, 1
    %s36 = scalar_select %p33, %s34, %s35
    %p39 = pneg %p33
    %p40 = scmp.eq.s32.totalorder %s10, 3
    %p41 = por %p39, %p40
    %p42 = scmp.ne.s32.totalorder %s34, %s37
    %p43 = scmp.eq.s32.totalorder %s10, 0
    %p44 = por %p42, %p43
    %p45 = scmp.ne.s32.totalorder %s34, %s37
    %p46 = scmp.eq.s32.totalorder %s15, 3
    %p47 = por %p45, %p46
    %p48 = scmp.ne.s32.totalorder %s37, %s38
    %p49 = scmp.eq.s32.totalorder %s15, 0
    %p50 = por %p48, %p49
    %p51 = scmp.ne.s32.totalorder %s37, %s38
    %p52 = scmp.eq.s32.totalorder %s16, 3
    %p53 = por %p51, %p52
    %p55 = scmp.ne.s32.totalorder %s38, %s54
    %p56 = scmp.eq.s32.totalorder %s16, 0
    %p57 = por %p55, %p56
    %s58 = ssub.s32 %s18, %s25
    %p59 = scmp.eq.s32.totalorder %s58, 0
    %s61 = sadd.s32 %s60, 1
    %s62 = scalar_select %p59, %s60, %s61
    %p65 = pneg %p59
    %p66 = scmp.eq.s32.totalorder %s10, 3
    %p67 = por %p65, %p66
    %p68 = scmp.ne.s32.totalorder %s60, %s63
    %p69 = scmp.eq.s32.totalorder %s10, 0
    %p70 = por %p68, %p69
    %p71 = scmp.ne.s32.totalorder %s60, %s63
    %p72 = scmp.eq.s32.totalorder %s15, 3
    %p73 = por %p71, %p72
    %p74 = scmp.ne.s32.totalorder %s63, %s64
    %p75 = scmp.eq.s32.totalorder %s15, 0
    %p76 = por %p74, %p75
    %p77 = scmp.ne.s32.totalorder %s63, %s64
    %p78 = scmp.eq.s32.totalorder %s16, 3
    %p79 = por %p77, %p78
    %p81 = scmp.ne.s32.totalorder %s64, %s80
    %p82 = scmp.eq.s32.totalorder %s16, 0
    %p83 = por %p81, %p82
    %s85 = sadd.s32 %s84, 1
    %p88 = scmp.eq.s32.totalorder %s10, 3
    %p89 = scmp.ne.s32.totalorder %s84, %s86
    %p90 = scmp.eq.s32.totalorder %s10, 0
    %p91 = por %p89, %p90
    %p92 = scmp.ne.s32.totalorder %s84, %s86
    %p93 = scmp.eq.s32.totalorder %s15, 3
    %p94 = por %p92, %p93
    %p95 = scmp.ne.s32.totalorder %s86, %s87
    %p96 = scmp.eq.s32.totalorder %s15, 0
    %p97 = por %p95, %p96
    %p98 = scmp.ne.s32.totalorder %s86, %s87
    %p99 = scmp.eq.s32.totalorder %s16, 3
    %p100 = por %p98, %p99
    %p102 = scmp.ne.s32.totalorder %s87, %s101
    %p103 = scmp.eq.s32.totalorder %s16, 0
    %p104 = por %p102, %p103
    %s106 = sadd.s32 %s105, 1
    %p109 = scmp.eq.s32.totalorder %s10, 3
    %p110 = scmp.ne.s32.totalorder %s105, %s107
    %p111 = scmp.eq.s32.totalorder %s10, 0
    %p112 = por %p110, %p111
    %p113 = scmp.ne.s32.totalorder %s105, %s107
    %p114 = scmp.eq.s32.totalorder %s15, 3
    %p115 = por %p113, %p114
    %p116 = scmp.ne.s32.totalorder %s107, %s108
    %p117 = scmp.eq.s32.totalorder %s15, 0
    %p118 = por %p116, %p117
    %p119 = scmp.ne.s32.totalorder %s107, %s108
    %p120 = scmp.eq.s32.totalorder %s16, 3
    %p121 = por %p119, %p120
    %p123 = scmp.ne.s32.totalorder %s108, %s122
    %p124 = scmp.eq.s32.totalorder %s16, 0
    %p125 = por %p123, %p124
    %s126 = ssub.s32 %s17, %s29
    %p127 = scmp.eq.s32.totalorder %s126, 0
    %s129 = sadd.s32 %s128, 1
    %s130 = scalar_select %p127, %s128, %s129
    %p133 = pneg %p127
    %p134 = scmp.eq.s32.totalorder %s10, 3
    %p135 = por %p133, %p134
    %p136 = scmp.ne.s32.totalorder %s128, %s131
    %p137 = scmp.eq.s32.totalorder %s10, 0
    %p138 = por %p136, %p137
    %p139 = scmp.ne.s32.totalorder %s128, %s131
    %p140 = scmp.eq.s32.totalorder %s15, 3
    %p141 = por %p139, %p140
    %p142 = scmp.ne.s32.totalorder %s131, %s132
    %p143 = scmp.eq.s32.totalorder %s15, 0
    %p144 = por %p142, %p143
    %p145 = scmp.ne.s32.totalorder %s131, %s132
    %p146 = scmp.eq.s32.totalorder %s16, 3
    %p147 = por %p145, %p146
    %p149 = scmp.ne.s32.totalorder %s132, %s148
    %p150 = scmp.eq.s32.totalorder %s16, 0
    %p151 = por %p149, %p150
    %p152 = scmp.le.s32.totalorder 1, %s10
    %p153 = scmp.lt.s32.totalorder %s10, 5
    %p154 = pnand %p152, %p153
    %p155 = pneg %p154
    // Predicated region
    $region9: #{kegcn_v2_forward.2} parent=5 // pred_check
      _
    $region10: #{kegcn_v2_forward.2} parent=5 // pred_check_branch
      %157 = sbr.rel (%p154) target = $region12
    $region11: #{kegcn_v2_forward.2} parent=5 // pred_region
      %s158 = ssub.s32 %s10, 1
      // Predicated region
      $region13: #{kegcn_v2_forward.2} parent=11 // pred_check
        %p159 = pneg %p76
      $region14: #{kegcn_v2_forward.2} parent=11 // pred_check_branch
        %161 = sbr.rel (%p159) target = $region16
      $region15: #{kegcn_v2_forward.2} parent=11 // pred_region
        %s162 = smul.u32 16, %s20
        %p163 = scmp.lt.s32.totalorder %s162, 15
        %s164 = scalar_select %p163, %s162, 15
        %s165 = smul.addr %s164, 4
        %s166 = scalar_lea.vmem %s1, %s165
        %s167 = smul.u32 16, %s20
      $region16: #{kegcn_v2_forward.2} parent=11 // pred_fallthru
        _
      // Predicated region
      $region17: #{kegcn_v2_forward.2} parent=11 // pred_check
        %p168 = pneg %p97
      $region18: #{kegcn_v2_forward.2} parent=11 // pred_check_branch
        %170 = sbr.rel (%p168) target = $region20
      $region19: #{kegcn_v2_forward.2} parent=11 // pred_region
        _
      $region20: #{kegcn_v2_forward.2} parent=11 // pred_fallthru
        _
      // Predicated region
      $region21: #{kegcn_v2_forward.2} parent=11 // pred_check
        %p171 = pneg %p118
      $region22: #{kegcn_v2_forward.2} parent=11 // pred_check_branch
        %173 = sbr.rel (%p171) target = $region24
      $region23: #{kegcn_v2_forward.2} parent=11 // pred_region
        _
      $region24: #{kegcn_v2_forward.2} parent=11 // pred_fallthru
        _
    $region12: #{kegcn_v2_forward.2} parent=5 // pred_fallthru
      _
    %p174 = scmp.lt.s32.totalorder %s10, 4
    // Predicated region
    $region25: #{kegcn_v2_forward.2} parent=5 // pred_check
      %p175 = pneg %p174
    $region26: #{kegcn_v2_forward.2} parent=5 // pred_check_branch
      %177 = sbr.rel (%p175) target = $region28
    $region27: #{kegcn_v2_forward.2} parent=5 // pred_region
      // Predicated region
      $region29: #{kegcn_v2_forward.2} parent=27 // pred_check
        %p178 = pneg %p44
      $region30: #{kegcn_v2_forward.2} parent=27 // pred_check_branch
        %180 = sbr.rel (%p178) target = $region32
      $region31: #{kegcn_v2_forward.2} parent=27 // pred_region
        %s181 = smul.u32 4, %s17
        %p182 = scmp.lt.s32.totalorder %s181, 15
        %s183 = scalar_select %p182, %s181, 15
        %p184 = scmp.lt.s32.totalorder %s18, 0
        %s185 = scalar_select %p184, %s18, 0
        %s186 = sadd.s32 %s185, %s183
        %s187 = smul.addr %s186, 4
        %s188 = scalar_lea.vmem %s0, %s187
        %s189 = smul.u32 4, %s17
      $region32: #{kegcn_v2_forward.2} parent=27 // pred_fallthru
        _
    $region28: #{kegcn_v2_forward.2} parent=5 // pred_fallthru
      _
    %p190 = scmp.le.s32.totalorder 1, %s10
    %p191 = scmp.lt.s32.totalorder %s10, 5
    %p192 = pnand %p190, %p191
    %p193 = pneg %p192
    // Predicated region
    $region33: #{kegcn_v2_forward.2} parent=5 // pred_check
      _
    $region34: #{kegcn_v2_forward.2} parent=5 // pred_check_branch
      %195 = sbr.rel (%p192) target = $region36
    $region35: #{kegcn_v2_forward.2} parent=5 // pred_region
      %s196 = ssub.s32 %s10, 1
      %s197 = smul.u32 4, %s19
      %p198 = scmp.lt.s32.totalorder %s197, 15
      %s199 = scalar_select %p198, %s197, 15
      %p200 = scmp.lt.s32.totalorder %s20, 0
      %s201 = scalar_select %p200, %s20, 0
      %s202 = sadd.s32 %s201, %s199
      %s203 = smul.addr %s202, 4
      %s204 = scalar_lea.vmem %s0, %s203
      %p205 = pneg %p50
      %p206 = pneg %p47
      %s207 = smul.u32 16, %s20
      %p208 = scmp.lt.s32.totalorder %s207, 15
      %s209 = scalar_select %p208, %s207, 15
      %s210 = smul.addr %s209, 4
      %s211 = scalar_lea.vmem %s1, %s210
      %p212 = pneg %p76
      %p213 = pneg %p73
      %p214 = pneg %p97
      %p215 = pneg %p94
      %p216 = pneg %p118
      %p217 = pneg %p115
      %p218 = pneg %p144
      %p219 = pneg %p141
      %s220 = smul.u32 4, %s19
      %p221 = scmp.lt.s32.totalorder %s220, 15
      %s222 = scalar_select %p221, %s220, 15
      %s223 = smul.addr %s222, 4
      %s224 = scalar_lea.vmem %s4, %s223
      %s225 = smul.u32 4, %s19
      %p226 = scmp.lt.s32.totalorder %s225, 15
      %s227 = scalar_select %p226, %s225, 15
      %p228 = scmp.lt.s32.totalorder %s20, 0
      %s229 = scalar_select %p228, %s20, 0
      %s230 = sadd.s32 %s229, %s227
      %s231 = smul.addr %s230, 4
      %s232 = scalar_lea.vmem %s0, %s231
      %s233 = smul.u32 4, %s19
      %s234 = smul.u32 16, %s20
      %p235 = scmp.lt.s32.totalorder %s234, 15
      %s236 = scalar_select %p235, %s234, 15
      %s237 = smul.addr %s236, 4
      %s238 = scalar_lea.vmem %s1, %s237
      %s239 = smul.u32 16, %s20
      %s240 = smul.u32 4, %s19
      %p241 = scmp.lt.s32.totalorder %s240, 15
      %s242 = scalar_select %p241, %s240, 15
      %s243 = smul.addr %s242, 4
      %s244 = scalar_lea.vmem %s4, %s243
      %s245 = smul.u32 4, %s19
      %p247 = scmp.eq.s32.totalorder %s20, 0
      // Predicated region
      $region37: #{kegcn_v2_forward.2} parent=35 // pred_check
        %p248 = pneg %p247
      $region38: #{kegcn_v2_forward.2} parent=35 // pred_check_branch
        %250 = sbr.rel (%p248) target = $region40
      $region39: #{kegcn_v2_forward.2} parent=35 // pred_region
        %251 = vst [vmem:[#allocation2] sm:$0xff] 0.0
        %252 = vst [vmem:[#allocation2 + $0x8] sm:$0xff] 0.0
        %253 = vst [vmem:[#allocation2 + $0x10] sm:$0xff] 0.0
        %254 = vst [vmem:[#allocation2 + $0x18] sm:$0xff] 0.0
      $region40: #{kegcn_v2_forward.2} parent=35 // pred_fallthru
        _
      %v255 = vld [vmem:[#allocation2] sm:$0xff]
      %v256 = vld [vmem:[#allocation2 + $0x8] sm:$0xff]
      %v257 = vld [vmem:[#allocation2 + $0x10] sm:$0xff]
      %v258 = vld [vmem:[#allocation2 + $0x18] sm:$0xff]
      %v259 = vld [vmem:[%s232] sm:$0xf]
      %v260 = vld [vmem:[%s232 + $0x4] sm:$0xf]
      %v261 = vld [vmem:[%s232 + $0x8] sm:$0xf]
      %v262 = vld [vmem:[%s232 + $0xc] sm:$0xf]
      %v263 = vld [vmem:[%s238] sm:$0xf]
      %v264 = vld [vmem:[%s238 + $0x4] sm:$0xf]
      %v265 = vld [vmem:[%s238 + $0x8] sm:$0xf]
      %v266 = vld [vmem:[%s238 + $0xc] sm:$0xf]
      %v267 = vld [vmem:[%s238 + $0x10] sm:$0xf]
      %v268 = vld [vmem:[%s238 + $0x14] sm:$0xf]
      %v269 = vld [vmem:[%s238 + $0x18] sm:$0xf]
      %v270 = vld [vmem:[%s238 + $0x1c] sm:$0xf]
      %v271 = vld [vmem:[%s238 + $0x20] sm:$0xf]
      %v272 = vld [vmem:[%s238 + $0x24] sm:$0xf]
      %v273 = vld [vmem:[%s238 + $0x28] sm:$0xf]
      %v274 = vld [vmem:[%s238 + $0x2c] sm:$0xf]
      %v275 = vld [vmem:[%s238 + $0x30] sm:$0xf]
      %v276 = vld [vmem:[%s238 + $0x34] sm:$0xf]
      %v277 = vld [vmem:[%s238 + $0x38] sm:$0xf]
      %v278 = vld [vmem:[%s238 + $0x3c] sm:$0xf]
      %v283 = vunpack.c.l.b16 %v259
      %v284 = vunpack.c.l.b16 %v260
      %v285 = vunpack.c.l.b16 %v261
      %v286 = vunpack.c.l.b16 %v262
      %v287 = vpack.c.b16 %v284, %v283
      %v288 = vpack.c.b16 %v286, %v285
      %v307 = vunpack.c.l.b16 %v263
      %v308 = vunpack.c.l.b16 %v264
      %v309 = vunpack.c.l.b16 %v265
      %v310 = vunpack.c.l.b16 %v266
      %v311 = vunpack.c.l.b16 %v267
      %v312 = vunpack.c.l.b16 %v268
      %v313 = vunpack.c.l.b16 %v269
      %v314 = vunpack.c.l.b16 %v270
      %v315 = vunpack.c.l.b16 %v271
      %v316 = vunpack.c.l.b16 %v272
      %v317 = vunpack.c.l.b16 %v273
      %v318 = vunpack.c.l.b16 %v274
      %v319 = vunpack.c.l.b16 %v275
      %v320 = vunpack.c.l.b16 %v276
      %v321 = vunpack.c.l.b16 %v277
      %v322 = vunpack.c.l.b16 %v278
      %v323 = vpack.c.b16 %v308, %v307
      %v324 = vpack.c.b16 %v310, %v309
      %v325 = vpack.c.b16 %v312, %v311
      %v326 = vpack.c.b16 %v314, %v313
      %v327 = vpack.c.b16 %v316, %v315
      %v328 = vpack.c.b16 %v318, %v317
      %v329 = vpack.c.b16 %v320, %v319
      %v330 = vpack.c.b16 %v322, %v321
      %339 = vmatprep.subr.bf16.mxu0 0
      %340 = vmatpush1.bf16.msra.mxu0 %v323
      %341 = vmatprep.subr.bf16.mxu0 0
      %342 = vmatpush1.bf16.msra.mxu0 %v324
      %343 = vmatprep.subr.bf16.mxu0 0
      %344 = vmatpush1.bf16.msra.mxu0 %v325
      %345 = vmatprep.subr.bf16.mxu0 0
      %346 = vmatpush1.bf16.msra.mxu0 %v326
      %347 = vmatprep.subr.bf16.mxu0 0
      %348 = vmatpush1.bf16.msra.mxu0 %v327
      %349 = vmatprep.subr.bf16.mxu0 0
      %350 = vmatpush1.bf16.msra.mxu0 %v328
      %351 = vmatprep.subr.bf16.mxu0 0
      %352 = vmatpush1.bf16.msra.mxu0 %v329
      %353 = vmatprep.subr.bf16.mxu0 0
      %354 = vmatpush1.bf16.msra.mxu0 %v330
      %355 = vmatprep.subr.bf16.mxu0 0
      %356 = vmatpush1.bf16.msra.mxu0 0
      %357 = vmatprep.subr.bf16.mxu0 0
      %358 = vmatpush1.bf16.msra.mxu0 0
      %359 = vmatprep.subr.bf16.mxu0 0
      %360 = vmatpush1.bf16.msra.mxu0 0
      %361 = vmatprep.subr.bf16.mxu0 0
      %362 = vmatpush1.bf16.msra.mxu0 0
      %363 = vmatprep.subr.bf16.mxu0 0
      %364 = vmatpush1.bf16.msra.mxu0 0
      %365 = vmatprep.subr.bf16.mxu0 0
      %366 = vmatpush1.bf16.msra.mxu0 0
      %367 = vmatprep.subr.bf16.mxu0 0
      %368 = vmatpush1.bf16.msra.mxu0 0
      %369 = vmatprep.subr.bf16.mxu0 0
      %370 = vmatpush1.bf16.msra.mxu0 0
      %371 = vmatprep.mubr.bf16.mxu0 0
      %372 = vmatmul.mubr.bf16.gmra.mrb[0].mxu0 %v287
      %v373 = vpop.f32.mrb[0].mxu0
      %v374 = vadd.f32 0.0, %v373
      %v375 = vpop.f32.mrb[0].mxu0
      %v376 = vpop.f32.mrb[0].mxu0
      %v377 = vadd.f32 0.0, %v376
      %v378 = vpop.f32.mrb[0].mxu0
      %379 = vmatprep.mubr.bf16.mxu0 0
      %380 = vmatmul.mubr.bf16.gmra.mrb[0].mxu0 %v288
      %v381 = vpop.f32.mrb[0].mxu0
      %v382 = vadd.f32 0.0, %v381
      %v383 = vpop.f32.mrb[0].mxu0
      %v384 = vpop.f32.mrb[0].mxu0
      %v385 = vadd.f32 0.0, %v384
      %v386 = vpop.f32.mrb[0].mxu0
      %387 = vdwg.mxu0
      %v388 = vadd.f32 %v255, %v374
      %v389 = vadd.f32 %v256, %v377
      %v390 = vadd.f32 %v257, %v382
      %v391 = vadd.f32 %v258, %v385
      %392 = vst [vmem:[#allocation2] sm:$0xff] %v388
      %393 = vst [vmem:[#allocation2 + $0x8] sm:$0xff] %v389
      %394 = vst [vmem:[#allocation2 + $0x10] sm:$0xff] %v390
      %395 = vst [vmem:[#allocation2 + $0x18] sm:$0xff] %v391
      // Predicated region
      $region41: #{kegcn_v2_forward.2} parent=35 // pred_check
        %p396 = pneg %p247
      $region42: #{kegcn_v2_forward.2} parent=35 // pred_check_branch
        %398 = sbr.rel (%p396) target = $region44
      $region43: #{kegcn_v2_forward.2} parent=35 // pred_region
        %v399 = vld [vmem:[#allocation2] sm:$0xff]
        %v400 = vld [vmem:[#allocation2 + $0x8] sm:$0xff]
        %v401 = vld [vmem:[#allocation2 + $0x10] sm:$0xff]
        %v402 = vld [vmem:[#allocation2 + $0x18] sm:$0xff]
        %v403 = vpack.c.bf16 %v400, %v399
        %v404 = vpack.c.bf16 %v402, %v401
        %v405 = vld [vmem:[%s2] sm:$0xf]
        %v406 = vld [vmem:[%s2 + $0x4] sm:$0xf]
        %v407 = vld [vmem:[%s2 + $0x8] sm:$0xf]
        %v408 = vld [vmem:[%s2 + $0xc] sm:$0xf]
        %v409 = vld [vmem:[%s2 + $0x10] sm:$0xf]
        %v410 = vld [vmem:[%s2 + $0x14] sm:$0xf]
        %v411 = vld [vmem:[%s2 + $0x18] sm:$0xf]
        %v412 = vld [vmem:[%s2 + $0x1c] sm:$0xf]
        %v413 = vld [vmem:[%s2 + $0x20] sm:$0xf]
        %v414 = vld [vmem:[%s2 + $0x24] sm:$0xf]
        %v415 = vld [vmem:[%s2 + $0x28] sm:$0xf]
        %v416 = vld [vmem:[%s2 + $0x2c] sm:$0xf]
        %v417 = vld [vmem:[%s2 + $0x30] sm:$0xf]
        %v418 = vld [vmem:[%s2 + $0x34] sm:$0xf]
        %v419 = vld [vmem:[%s2 + $0x38] sm:$0xf]
        %v420 = vld [vmem:[%s2 + $0x3c] sm:$0xf]
        %v421 = vld [vmem:[%s3] sm:$0x1]
        %v422 = vlaneseq
        %v423 = vshrl.u32 %v422, 7
        %v424 = vsub.s32 0, %v423
        %v425 = vrot.slane %v421, %v424
        %v442 = vunpack.c.l.b16 %v405
        %v443 = vunpack.c.l.b16 %v406
        %v444 = vunpack.c.l.b16 %v407
        %v445 = vunpack.c.l.b16 %v408
        %v446 = vunpack.c.l.b16 %v409
        %v447 = vunpack.c.l.b16 %v410
        %v448 = vunpack.c.l.b16 %v411
        %v449 = vunpack.c.l.b16 %v412
        %v450 = vunpack.c.l.b16 %v413
        %v451 = vunpack.c.l.b16 %v414
        %v452 = vunpack.c.l.b16 %v415
        %v453 = vunpack.c.l.b16 %v416
        %v454 = vunpack.c.l.b16 %v417
        %v455 = vunpack.c.l.b16 %v418
        %v456 = vunpack.c.l.b16 %v419
        %v457 = vunpack.c.l.b16 %v420
        %v458 = vpack.c.b16 %v443, %v442
        %v459 = vpack.c.b16 %v445, %v444
        %v460 = vpack.c.b16 %v447, %v446
        %v461 = vpack.c.b16 %v449, %v448
        %v462 = vpack.c.b16 %v451, %v450
        %v463 = vpack.c.b16 %v453, %v452
        %v464 = vpack.c.b16 %v455, %v454
        %v465 = vpack.c.b16 %v457, %v456
        %474 = vmatprep.subr.bf16.mxu0 0
        %475 = vmatpush1.bf16.msra.mxu0 %v458
        %476 = vmatprep.subr.bf16.mxu0 0
        %477 = vmatpush1.bf16.msra.mxu0 %v459
        %478 = vmatprep.subr.bf16.mxu0 0
        %479 = vmatpush1.bf16.msra.mxu0 %v460
        %480 = vmatprep.subr.bf16.mxu0 0
        %481 = vmatpush1.bf16.msra.mxu0 %v461
        %482 = vmatprep.subr.bf16.mxu0 0
        %483 = vmatpush1.bf16.msra.mxu0 %v462
        %484 = vmatprep.subr.bf16.mxu0 0
        %485 = vmatpush1.bf16.msra.mxu0 %v463
        %486 = vmatprep.subr.bf16.mxu0 0
        %487 = vmatpush1.bf16.msra.mxu0 %v464
        %488 = vmatprep.subr.bf16.mxu0 0
        %489 = vmatpush1.bf16.msra.mxu0 %v465
        %490 = vmatprep.subr.bf16.mxu0 0
        %491 = vmatpush1.bf16.msra.mxu0 0
        %492 = vmatprep.subr.bf16.mxu0 0
        %493 = vmatpush1.bf16.msra.mxu0 0
        %494 = vmatprep.subr.bf16.mxu0 0
        %495 = vmatpush1.bf16.msra.mxu0 0
        %496 = vmatprep.subr.bf16.mxu0 0
        %497 = vmatpush1.bf16.msra.mxu0 0
        %498 = vmatprep.subr.bf16.mxu0 0
        %499 = vmatpush1.bf16.msra.mxu0 0
        %500 = vmatprep.subr.bf16.mxu0 0
        %501 = vmatpush1.bf16.msra.mxu0 0
        %502 = vmatprep.subr.bf16.mxu0 0
        %503 = vmatpush1.bf16.msra.mxu0 0
        %504 = vmatprep.subr.bf16.mxu0 0
        %505 = vmatpush1.bf16.msra.mxu0 0
        %506 = vmatprep.mubr.bf16.mxu0 0
        %507 = vmatmul.mubr.bf16.gmra.mrb[0].mxu0 %v403
        %v508 = vpop.f32.mrb[0].mxu0
        %v509 = vadd.f32 %v425, %v508
        %v510 = vpop.f32.mrb[0].mxu0
        %v511 = vpop.f32.mrb[0].mxu0
        %v512 = vadd.f32 %v425, %v511
        %v513 = vpop.f32.mrb[0].mxu0
        %514 = vmatprep.mubr.bf16.mxu0 0
        %515 = vmatmul.mubr.bf16.gmra.mrb[0].mxu0 %v404
        %v516 = vpop.f32.mrb[0].mxu0
        %v517 = vadd.f32 %v425, %v516
        %v518 = vpop.f32.mrb[0].mxu0
        %v519 = vpop.f32.mrb[0].mxu0
        %v520 = vadd.f32 %v425, %v519
        %v521 = vpop.f32.mrb[0].mxu0
        %522 = vdwg.mxu0
        %v523 = vmax.f32 %v509, 0.0
        %v524 = vmax.f32 %v512, 0.0
        %v525 = vmax.f32 %v517, 0.0
        %v526 = vmax.f32 %v520, 0.0
        %v527 = vpack.c.bf16 %v524, %v523
        %v528 = vpack.c.bf16 %v526, %v525
        %v531 = vunpack.c.l.b16 %v527
        %v532 = vunpack.c.h.b16 %v527
        %v533 = vunpack.c.l.b16 %v528
        %v534 = vunpack.c.h.b16 %v528
        %v535 = vpack.c.b16 %v531, %v531
        %v536 = vpack.c.b16 %v532, %v532
        %v537 = vpack.c.b16 %v533, %v533
        %v538 = vpack.c.b16 %v534, %v534
        %543 = vst [vmem:[%s244] sm:$0xf] %v535
        %544 = vst [vmem:[%s244 + $0x4] sm:$0xf] %v536
        %545 = vst [vmem:[%s244 + $0x8] sm:$0xf] %v537
        %546 = vst [vmem:[%s244 + $0xc] sm:$0xf] %v538
      $region44: #{kegcn_v2_forward.2} parent=35 // pred_fallthru
        _
      %s547 = smul.u32 4, %s19
      %p548 = scmp.lt.s32.totalorder %s547, 15
      %s549 = scalar_select %p548, %s547, 15
      %s550 = smul.addr %s549, 4
      %s551 = scalar_lea.vmem %s4, %s550
      // Predicated region
      $region45: #{kegcn_v2_forward.2} parent=35 // pred_check
        %p552 = pneg %p141
      $region46: #{kegcn_v2_forward.2} parent=35 // pred_check_branch
        %554 = sbr.rel (%p552) target = $region48
      $region47: #{kegcn_v2_forward.2} parent=35 // pred_region
        %s555 = smul.u32 4, %s19
      $region48: #{kegcn_v2_forward.2} parent=35 // pred_fallthru
        _
    $region36: #{kegcn_v2_forward.2} parent=5 // pred_fallthru
      _
    %p556 = scmp.le.s32.totalorder 2, %s10
    // Predicated region
    $region49: #{kegcn_v2_forward.2} parent=5 // pred_check
      %p557 = pneg %p556
    $region50: #{kegcn_v2_forward.2} parent=5 // pred_check_branch
      %559 = sbr.rel (%p557) target = $region52
    $region51: #{kegcn_v2_forward.2} parent=5 // pred_region
      %s560 = ssub.s32 %s10, 2
      // Predicated region
      $region53: #{kegcn_v2_forward.2} parent=51 // pred_check
        %p561 = pneg %p147
      $region54: #{kegcn_v2_forward.2} parent=51 // pred_check_branch
        %563 = sbr.rel (%p561) target = $region56
      $region55: #{kegcn_v2_forward.2} parent=51 // pred_region
        %s564 = smul.u32 4, %s21
        %p565 = scmp.lt.s32.totalorder %s564, 15
        %s566 = scalar_select %p565, %s564, 15
        %s567 = smul.addr %s566, 4
        %s568 = scalar_lea.vmem %s4, %s567
      $region56: #{kegcn_v2_forward.2} parent=51 // pred_fallthru
        _
    $region52: #{kegcn_v2_forward.2} parent=5 // pred_fallthru
      _
  $region6: #{kegcn_v2_forward.2} parent=0 // loop_footer
    %s14 = sadd.s32 1, %s10
  $region7: #{kegcn_v2_forward.2} parent=0 // loop_footer_branch
    %9 = sbr.rel target = $region3
  $region8: #{kegcn_v2_forward.2} parent=0 // loop_exit
    _

// kernel: kegcn_v2_forward.3
$region0: #{kegcn_v2_forward.3}
  #allocation0 [shape = 'u32[]', space=smem, size = 0x4, offset = 0x4, fixed_abs, tag = 'smem constant byte address 0x4 - core index']
  #allocation1 [shape = 'u32[144,128]{1,0:T(1,128)}', space=vmem, size = 0x12000, scoped, tag = 'internal scratch']
  #allocation2 [shape = 'f32[32,128]{1,0:T(8,128)}', space=vmem, size = 0x4000, scoped, tag = 'scratch operand']
  %s0 = inlined_call_operand.vmem [shape: bf16[128,128], index: 0, kind: input, shape index: {}]
  %s1 = inlined_call_operand.vmem [shape: bf16[128,128], index: 1, kind: input, shape index: {}]
  %s2 = inlined_call_operand.vmem [shape: bf16[128,128], index: 2, kind: input, shape index: {}]
  %s3 = inlined_call_operand.vmem [shape: f32[8,128], index: 3, kind: input, shape index: {}]
  %s4 = inlined_call_operand.vmem [shape: bf16[128,128], index: 4, kind: input, shape index: {}]
  %s5 = inlined_call_operand.vmem [shape: bf16[128,128], index: 5, kind: input, shape index: {}]
  %s6 = inlined_call_operand.vmem [shape: f32[128,128], index: 6, kind: output, shape index: {}]
  %s7 = sld [smem:[#allocation0]]
  $region65: #{kegcn_v2_forward.3} parent=0
    _
  %s9 = ssub.s32 1, %s7
  %s10 = scalar_select 0, %s9, %s7
  loop: start=0, step=1, limit=6
  $region2: #{kegcn_v2_forward.3} parent=0 // loop_pre_header
    _
  $region3: #{kegcn_v2_forward.3} parent=0 // loop_header
    %s12 = sphi 0, %s16
    %p13 = scmp.ge.s32.totalorder %s12, 6
    %s19 = sphi 0, %s31
    %s20 = sphi 0, %s27
    %s21 = sphi 0, %s19
    %s22 = sphi 0, %s20
    %s23 = sphi 0, %s21
    %s24 = sphi 0, %s22
    %s36 = sphi 0, %s38
    %s39 = sphi 0, %s36
    %s40 = sphi 0, %s39
    %s56 = sphi 0, %s40
    %s62 = sphi 0, %s64
    %s65 = sphi 0, %s62
    %s66 = sphi 0, %s65
    %s82 = sphi 0, %s66
    %s86 = sphi 0, %s86
    %s88 = sphi 0, %s86
    %s89 = sphi 0, %s88
    %s103 = sphi 0, %s89
    %s107 = sphi 0, %s107
    %s109 = sphi 0, %s107
    %s110 = sphi 0, %s109
    %s124 = sphi 0, %s110
    %s128 = sphi 0, %s128
    %s130 = sphi 0, %s128
    %s131 = sphi 0, %s130
    %s145 = sphi 0, %s131
    %s149 = sphi 0, %s149
    %s151 = sphi 0, %s149
    %s152 = sphi 0, %s151
    %s166 = sphi 0, %s152
    %s172 = sphi 0, %s174
    %s175 = sphi 0, %s172
    %s176 = sphi 0, %s175
    %s192 = sphi 0, %s176
  $region4: #{kegcn_v2_forward.3} parent=0 // loop_header_branch
    %15 = sbr.rel (%p13) target = $region8
  $region5: #{kegcn_v2_forward.3} parent=0 // loop_body
    %s17 = ssub.s32 %s12, 1
    %s18 = ssub.s32 %s12, 2
    %s25 = sadd.s32 1, %s20
    %p26 = scmp.ge.s32.totalorder %s25, 1
    %s27 = scalar_select %p26, 0, %s25
    %s28 = sadd.s32 1, %s19
    %s29 = scalar_select %p26, %s28, %s19
    %p30 = scmp.ge.s32.totalorder %s29, 4
    %s31 = scalar_select %p30, 0, %s29
    %s32 = ssub.s32 %s19, %s31
    %s33 = ssub.s32 %s20, %s27
    %s34 = sor.u32 %s32, %s33
    %p35 = scmp.eq.s32.totalorder %s34, 0
    %s37 = sadd.s32 %s36, 1
    %s38 = scalar_select %p35, %s36, %s37
    %p41 = pneg %p35
    %p42 = scmp.eq.s32.totalorder %s12, 3
    %p43 = por %p41, %p42
    %p44 = scmp.ne.s32.totalorder %s36, %s39
    %p45 = scmp.eq.s32.totalorder %s12, 0
    %p46 = por %p44, %p45
    %p47 = scmp.ne.s32.totalorder %s36, %s39
    %p48 = scmp.eq.s32.totalorder %s17, 3
    %p49 = por %p47, %p48
    %p50 = scmp.ne.s32.totalorder %s39, %s40
    %p51 = scmp.eq.s32.totalorder %s17, 0
    %p52 = por %p50, %p51
    %p53 = scmp.ne.s32.totalorder %s39, %s40
    %p54 = scmp.eq.s32.totalorder %s18, 3
    %p55 = por %p53, %p54
    %p57 = scmp.ne.s32.totalorder %s40, %s56
    %p58 = scmp.eq.s32.totalorder %s18, 0
    %p59 = por %p57, %p58
    %s60 = ssub.s32 %s20, %s27
    %p61 = scmp.eq.s32.totalorder %s60, 0
    %s63 = sadd.s32 %s62, 1
    %s64 = scalar_select %p61, %s62, %s63
    %p67 = pneg %p61
    %p68 = scmp.eq.s32.totalorder %s12, 3
    %p69 = por %p67, %p68
    %p70 = scmp.ne.s32.totalorder %s62, %s65
    %p71 = scmp.eq.s32.totalorder %s12, 0
    %p72 = por %p70, %p71
    %p73 = scmp.ne.s32.totalorder %s62, %s65
    %p74 = scmp.eq.s32.totalorder %s17, 3
    %p75 = por %p73, %p74
    %p76 = scmp.ne.s32.totalorder %s65, %s66
    %p77 = scmp.eq.s32.totalorder %s17, 0
    %p78 = por %p76, %p77
    %p79 = scmp.ne.s32.totalorder %s65, %s66
    %p80 = scmp.eq.s32.totalorder %s18, 3
    %p81 = por %p79, %p80
    %p83 = scmp.ne.s32.totalorder %s66, %s82
    %p84 = scmp.eq.s32.totalorder %s18, 0
    %p85 = por %p83, %p84
    %s87 = sadd.s32 %s86, 1
    %p90 = scmp.eq.s32.totalorder %s12, 3
    %p91 = scmp.ne.s32.totalorder %s86, %s88
    %p92 = scmp.eq.s32.totalorder %s12, 0
    %p93 = por %p91, %p92
    %p94 = scmp.ne.s32.totalorder %s86, %s88
    %p95 = scmp.eq.s32.totalorder %s17, 3
    %p96 = por %p94, %p95
    %p97 = scmp.ne.s32.totalorder %s88, %s89
    %p98 = scmp.eq.s32.totalorder %s17, 0
    %p99 = por %p97, %p98
    %p100 = scmp.ne.s32.totalorder %s88, %s89
    %p101 = scmp.eq.s32.totalorder %s18, 3
    %p102 = por %p100, %p101
    %p104 = scmp.ne.s32.totalorder %s89, %s103
    %p105 = scmp.eq.s32.totalorder %s18, 0
    %p106 = por %p104, %p105
    %s108 = sadd.s32 %s107, 1
    %p111 = scmp.eq.s32.totalorder %s12, 3
    %p112 = scmp.ne.s32.totalorder %s107, %s109
    %p113 = scmp.eq.s32.totalorder %s12, 0
    %p114 = por %p112, %p113
    %p115 = scmp.ne.s32.totalorder %s107, %s109
    %p116 = scmp.eq.s32.totalorder %s17, 3
    %p117 = por %p115, %p116
    %p118 = scmp.ne.s32.totalorder %s109, %s110
    %p119 = scmp.eq.s32.totalorder %s17, 0
    %p120 = por %p118, %p119
    %p121 = scmp.ne.s32.totalorder %s109, %s110
    %p122 = scmp.eq.s32.totalorder %s18, 3
    %p123 = por %p121, %p122
    %p125 = scmp.ne.s32.totalorder %s110, %s124
    %p126 = scmp.eq.s32.totalorder %s18, 0
    %p127 = por %p125, %p126
    %s129 = sadd.s32 %s128, 1
    %p132 = scmp.eq.s32.totalorder %s12, 3
    %p133 = scmp.ne.s32.totalorder %s128, %s130
    %p134 = scmp.eq.s32.totalorder %s12, 0
    %p135 = por %p133, %p134
    %p136 = scmp.ne.s32.totalorder %s128, %s130
    %p137 = scmp.eq.s32.totalorder %s17, 3
    %p138 = por %p136, %p137
    %p139 = scmp.ne.s32.totalorder %s130, %s131
    %p140 = scmp.eq.s32.totalorder %s17, 0
    %p141 = por %p139, %p140
    %p142 = scmp.ne.s32.totalorder %s130, %s131
    %p143 = scmp.eq.s32.totalorder %s18, 3
    %p144 = por %p142, %p143
    %p146 = scmp.ne.s32.totalorder %s131, %s145
    %p147 = scmp.eq.s32.totalorder %s18, 0
    %p148 = por %p146, %p147
    %s150 = sadd.s32 %s149, 1
    %p153 = scmp.eq.s32.totalorder %s12, 3
    %p154 = scmp.ne.s32.totalorder %s149, %s151
    %p155 = scmp.eq.s32.totalorder %s12, 0
    %p156 = por %p154, %p155
    %p157 = scmp.ne.s32.totalorder %s149, %s151
    %p158 = scmp.eq.s32.totalorder %s17, 3
    %p159 = por %p157, %p158
    %p160 = scmp.ne.s32.totalorder %s151, %s152
    %p161 = scmp.eq.s32.totalorder %s17, 0
    %p162 = por %p160, %p161
    %p163 = scmp.ne.s32.totalorder %s151, %s152
    %p164 = scmp.eq.s32.totalorder %s18, 3
    %p165 = por %p163, %p164
    %p167 = scmp.ne.s32.totalorder %s152, %s166
    %p168 = scmp.eq.s32.totalorder %s18, 0
    %p169 = por %p167, %p168
    %s170 = ssub.s32 %s19, %s31
    %p171 = scmp.eq.s32.totalorder %s170, 0
    %s173 = sadd.s32 %s172, 1
    %s174 = scalar_select %p171, %s172, %s173
    %p177 = pneg %p171
    %p178 = scmp.eq.s32.totalorder %s12, 3
    %p179 = por %p177, %p178
    %p180 = scmp.ne.s32.totalorder %s172, %s175
    %p181 = scmp.eq.s32.totalorder %s12, 0
    %p182 = por %p180, %p181
    %p183 = scmp.ne.s32.totalorder %s172, %s175
    %p184 = scmp.eq.s32.totalorder %s17, 3
    %p185 = por %p183, %p184
    %p186 = scmp.ne.s32.totalorder %s175, %s176
    %p187 = scmp.eq.s32.totalorder %s17, 0
    %p188 = por %p186, %p187
    %p189 = scmp.ne.s32.totalorder %s175, %s176
    %p190 = scmp.eq.s32.totalorder %s18, 3
    %p191 = por %p189, %p190
    %p193 = scmp.ne.s32.totalorder %s176, %s192
    %p194 = scmp.eq.s32.totalorder %s18, 0
    %p195 = por %p193, %p194
    %p196 = scmp.le.s32.totalorder 1, %s12
    %p197 = scmp.lt.s32.totalorder %s12, 5
    %p198 = pnand %p196, %p197
    %p199 = pneg %p198
    // Predicated region
    $region9: #{kegcn_v2_forward.3} parent=5 // pred_check
      _
    $region10: #{kegcn_v2_forward.3} parent=5 // pred_check_branch
      %201 = sbr.rel (%p198) target = $region12
    $region11: #{kegcn_v2_forward.3} parent=5 // pred_region
      %s202 = ssub.s32 %s12, 1
      // Predicated region
      $region13: #{kegcn_v2_forward.3} parent=11 // pred_check
        %p203 = pneg %p78
      $region14: #{kegcn_v2_forward.3} parent=11 // pred_check_branch
        %205 = sbr.rel (%p203) target = $region16
      $region15: #{kegcn_v2_forward.3} parent=11 // pred_region
        %s206 = smul.u32 16, %s22
        %p207 = scmp.lt.s32.totalorder %s206, 15
        %s208 = scalar_select %p207, %s206, 15
        %s209 = smul.addr %s208, 4
        %s210 = scalar_lea.vmem %s1, %s209
        %s211 = smul.u32 16, %s22
      $region16: #{kegcn_v2_forward.3} parent=11 // pred_fallthru
        _
      // Predicated region
      $region17: #{kegcn_v2_forward.3} parent=11 // pred_check
        %p212 = pneg %p99
      $region18: #{kegcn_v2_forward.3} parent=11 // pred_check_branch
        %214 = sbr.rel (%p212) target = $region20
      $region19: #{kegcn_v2_forward.3} parent=11 // pred_region
        _
      $region20: #{kegcn_v2_forward.3} parent=11 // pred_fallthru
        _
      // Predicated region
      $region21: #{kegcn_v2_forward.3} parent=11 // pred_check
        %p215 = pneg %p120
      $region22: #{kegcn_v2_forward.3} parent=11 // pred_check_branch
        %217 = sbr.rel (%p215) target = $region24
      $region23: #{kegcn_v2_forward.3} parent=11 // pred_region
        _
      $region24: #{kegcn_v2_forward.3} parent=11 // pred_fallthru
        _
      // Predicated region
      $region25: #{kegcn_v2_forward.3} parent=11 // pred_check
        %p218 = pneg %p141
      $region26: #{kegcn_v2_forward.3} parent=11 // pred_check_branch
        %220 = sbr.rel (%p218) target = $region28
      $region27: #{kegcn_v2_forward.3} parent=11 // pred_region
        _
      $region28: #{kegcn_v2_forward.3} parent=11 // pred_fallthru
        _
      // Predicated region
      $region29: #{kegcn_v2_forward.3} parent=11 // pred_check
        %p221 = pneg %p162
      $region30: #{kegcn_v2_forward.3} parent=11 // pred_check_branch
        %223 = sbr.rel (%p221) target = $region32
      $region31: #{kegcn_v2_forward.3} parent=11 // pred_region
        _
      $region32: #{kegcn_v2_forward.3} parent=11 // pred_fallthru
        _
    $region12: #{kegcn_v2_forward.3} parent=5 // pred_fallthru
      _
    %p224 = scmp.lt.s32.totalorder %s12, 4
    // Predicated region
    $region33: #{kegcn_v2_forward.3} parent=5 // pred_check
      %p225 = pneg %p224
    $region34: #{kegcn_v2_forward.3} parent=5 // pred_check_branch
      %227 = sbr.rel (%p225) target = $region36
    $region35: #{kegcn_v2_forward.3} parent=5 // pred_region
      // Predicated region
      $region37: #{kegcn_v2_forward.3} parent=35 // pred_check
        %p228 = pneg %p46
      $region38: #{kegcn_v2_forward.3} parent=35 // pred_check_branch
        %230 = sbr.rel (%p228) target = $region40
      $region39: #{kegcn_v2_forward.3} parent=35 // pred_region
        %s231 = smul.u32 4, %s19
        %p232 = scmp.lt.s32.totalorder %s231, 15
        %s233 = scalar_select %p232, %s231, 15
        %p234 = scmp.lt.s32.totalorder %s20, 0
        %s235 = scalar_select %p234, %s20, 0
        %s236 = sadd.s32 %s235, %s233
        %s237 = smul.addr %s236, 4
        %s238 = scalar_lea.vmem %s0, %s237
        %s239 = smul.u32 4, %s19
      $region40: #{kegcn_v2_forward.3} parent=35 // pred_fallthru
        _
    $region36: #{kegcn_v2_forward.3} parent=5 // pred_fallthru
      _
    %p240 = scmp.le.s32.totalorder 1, %s12
    %p241 = scmp.lt.s32.totalorder %s12, 5
    %p242 = pnand %p240, %p241
    %p243 = pneg %p242
    // Predicated region
    $region41: #{kegcn_v2_forward.3} parent=5 // pred_check
      _
    $region42: #{kegcn_v2_forward.3} parent=5 // pred_check_branch
      %245 = sbr.rel (%p242) target = $region44
    $region43: #{kegcn_v2_forward.3} parent=5 // pred_region
      %s246 = ssub.s32 %s12, 1
      %s247 = smul.u32 4, %s21
      %p248 = scmp.lt.s32.totalorder %s247, 15
      %s249 = scalar_select %p248, %s247, 15
      %p250 = scmp.lt.s32.totalorder %s22, 0
      %s251 = scalar_select %p250, %s22, 0
      %s252 = sadd.s32 %s251, %s249
      %s253 = smul.addr %s252, 4
      %s254 = scalar_lea.vmem %s0, %s253
      %p255 = pneg %p52
      %p256 = pneg %p49
      %s257 = smul.u32 16, %s22
      %p258 = scmp.lt.s32.totalorder %s257, 15
      %s259 = scalar_select %p258, %s257, 15
      %s260 = smul.addr %s259, 4
      %s261 = scalar_lea.vmem %s1, %s260
      %p262 = pneg %p78
      %p263 = pneg %p75
      %p264 = pneg %p99
      %p265 = pneg %p96
      %p266 = pneg %p120
      %p267 = pneg %p117
      %p268 = pneg %p141
      %p269 = pneg %p138
      %p270 = pneg %p162
      %p271 = pneg %p159
      %p272 = pneg %p188
      %p273 = pneg %p185
      %s274 = smul.u32 4, %s21
      %p275 = scmp.lt.s32.totalorder %s274, 15
      %s276 = scalar_select %p275, %s274, 15
      %s277 = smul.addr %s276, 8
      %s278 = scalar_lea.vmem %s6, %s277
      %s279 = smul.u32 4, %s21
      %p280 = scmp.lt.s32.totalorder %s279, 15
      %s281 = scalar_select %p280, %s279, 15
      %p282 = scmp.lt.s32.totalorder %s22, 0
      %s283 = scalar_select %p282, %s22, 0
      %s284 = sadd.s32 %s283, %s281
      %s285 = smul.addr %s284, 4
      %s286 = scalar_lea.vmem %s0, %s285
      %s287 = smul.u32 4, %s21
      %s288 = smul.u32 16, %s22
      %p289 = scmp.lt.s32.totalorder %s288, 15
      %s290 = scalar_select %p289, %s288, 15
      %s291 = smul.addr %s290, 4
      %s292 = scalar_lea.vmem %s1, %s291
      %s293 = smul.u32 16, %s22
      %s294 = smul.u32 4, %s21
      %p295 = scmp.lt.s32.totalorder %s294, 15
      %s296 = scalar_select %p295, %s294, 15
      %s297 = smul.addr %s296, 8
      %s298 = scalar_lea.vmem %s6, %s297
      %s299 = smul.u32 4, %s21
      %p301 = scmp.eq.s32.totalorder %s22, 0
      // Predicated region
      $region45: #{kegcn_v2_forward.3} parent=43 // pred_check
        %p302 = pneg %p301
      $region46: #{kegcn_v2_forward.3} parent=43 // pred_check_branch
        %304 = sbr.rel (%p302) target = $region48
      $region47: #{kegcn_v2_forward.3} parent=43 // pred_region
        %305 = vst [vmem:[#allocation2] sm:$0xff] 0.0
        %306 = vst [vmem:[#allocation2 + $0x8] sm:$0xff] 0.0
        %307 = vst [vmem:[#allocation2 + $0x10] sm:$0xff] 0.0
        %308 = vst [vmem:[#allocation2 + $0x18] sm:$0xff] 0.0
      $region48: #{kegcn_v2_forward.3} parent=43 // pred_fallthru
        _
      %v309 = vld [vmem:[#allocation2] sm:$0xff]
      %v310 = vld [vmem:[#allocation2 + $0x8] sm:$0xff]
      %v311 = vld [vmem:[#allocation2 + $0x10] sm:$0xff]
      %v312 = vld [vmem:[#allocation2 + $0x18] sm:$0xff]
      %v313 = vld [vmem:[%s286] sm:$0xf]
      %v314 = vld [vmem:[%s286 + $0x4] sm:$0xf]
      %v315 = vld [vmem:[%s286 + $0x8] sm:$0xf]
      %v316 = vld [vmem:[%s286 + $0xc] sm:$0xf]
      %v317 = vld [vmem:[%s292] sm:$0xf]
      %v318 = vld [vmem:[%s292 + $0x4] sm:$0xf]
      %v319 = vld [vmem:[%s292 + $0x8] sm:$0xf]
      %v320 = vld [vmem:[%s292 + $0xc] sm:$0xf]
      %v321 = vld [vmem:[%s292 + $0x10] sm:$0xf]
      %v322 = vld [vmem:[%s292 + $0x14] sm:$0xf]
      %v323 = vld [vmem:[%s292 + $0x18] sm:$0xf]
      %v324 = vld [vmem:[%s292 + $0x1c] sm:$0xf]
      %v325 = vld [vmem:[%s292 + $0x20] sm:$0xf]
      %v326 = vld [vmem:[%s292 + $0x24] sm:$0xf]
      %v327 = vld [vmem:[%s292 + $0x28] sm:$0xf]
      %v328 = vld [vmem:[%s292 + $0x2c] sm:$0xf]
      %v329 = vld [vmem:[%s292 + $0x30] sm:$0xf]
      %v330 = vld [vmem:[%s292 + $0x34] sm:$0xf]
      %v331 = vld [vmem:[%s292 + $0x38] sm:$0xf]
      %v332 = vld [vmem:[%s292 + $0x3c] sm:$0xf]
      %v337 = vunpack.c.l.b16 %v313
      %v338 = vunpack.c.l.b16 %v314
      %v339 = vunpack.c.l.b16 %v315
      %v340 = vunpack.c.l.b16 %v316
      %v341 = vpack.c.b16 %v338, %v337
      %v342 = vpack.c.b16 %v340, %v339
      %v361 = vunpack.c.l.b16 %v317
      %v362 = vunpack.c.l.b16 %v318
      %v363 = vunpack.c.l.b16 %v319
      %v364 = vunpack.c.l.b16 %v320
      %v365 = vunpack.c.l.b16 %v321
      %v366 = vunpack.c.l.b16 %v322
      %v367 = vunpack.c.l.b16 %v323
      %v368 = vunpack.c.l.b16 %v324
      %v369 = vunpack.c.l.b16 %v325
      %v370 = vunpack.c.l.b16 %v326
      %v371 = vunpack.c.l.b16 %v327
      %v372 = vunpack.c.l.b16 %v328
      %v373 = vunpack.c.l.b16 %v329
      %v374 = vunpack.c.l.b16 %v330
      %v375 = vunpack.c.l.b16 %v331
      %v376 = vunpack.c.l.b16 %v332
      %v377 = vpack.c.b16 %v362, %v361
      %v378 = vpack.c.b16 %v364, %v363
      %v379 = vpack.c.b16 %v366, %v365
      %v380 = vpack.c.b16 %v368, %v367
      %v381 = vpack.c.b16 %v370, %v369
      %v382 = vpack.c.b16 %v372, %v371
      %v383 = vpack.c.b16 %v374, %v373
      %v384 = vpack.c.b16 %v376, %v375
      %393 = vmatprep.subr.bf16.mxu0 0
      %394 = vmatpush1.bf16.msra.mxu0 %v377
      %395 = vmatprep.subr.bf16.mxu0 0
      %396 = vmatpush1.bf16.msra.mxu0 %v378
      %397 = vmatprep.subr.bf16.mxu0 0
      %398 = vmatpush1.bf16.msra.mxu0 %v379
      %399 = vmatprep.subr.bf16.mxu0 0
      %400 = vmatpush1.bf16.msra.mxu0 %v380
      %401 = vmatprep.subr.bf16.mxu0 0
      %402 = vmatpush1.bf16.msra.mxu0 %v381
      %403 = vmatprep.subr.bf16.mxu0 0
      %404 = vmatpush1.bf16.msra.mxu0 %v382
      %405 = vmatprep.subr.bf16.mxu0 0
      %406 = vmatpush1.bf16.msra.mxu0 %v383
      %407 = vmatprep.subr.bf16.mxu0 0
      %408 = vmatpush1.bf16.msra.mxu0 %v384
      %409 = vmatprep.subr.bf16.mxu0 0
      %410 = vmatpush1.bf16.msra.mxu0 0
      %411 = vmatprep.subr.bf16.mxu0 0
      %412 = vmatpush1.bf16.msra.mxu0 0
      %413 = vmatprep.subr.bf16.mxu0 0
      %414 = vmatpush1.bf16.msra.mxu0 0
      %415 = vmatprep.subr.bf16.mxu0 0
      %416 = vmatpush1.bf16.msra.mxu0 0
      %417 = vmatprep.subr.bf16.mxu0 0
      %418 = vmatpush1.bf16.msra.mxu0 0
      %419 = vmatprep.subr.bf16.mxu0 0
      %420 = vmatpush1.bf16.msra.mxu0 0
      %421 = vmatprep.subr.bf16.mxu0 0
      %422 = vmatpush1.bf16.msra.mxu0 0
      %423 = vmatprep.subr.bf16.mxu0 0
      %424 = vmatpush1.bf16.msra.mxu0 0
      %425 = vmatprep.mubr.bf16.mxu0 0
      %426 = vmatmul.mubr.bf16.gmra.mrb[0].mxu0 %v341
      %v427 = vpop.f32.mrb[0].mxu0
      %v428 = vadd.f32 0.0, %v427
      %v429 = vpop.f32.mrb[0].mxu0
      %v430 = vpop.f32.mrb[0].mxu0
      %v431 = vadd.f32 0.0, %v430
      %v432 = vpop.f32.mrb[0].mxu0
      %433 = vmatprep.mubr.bf16.mxu0 0
      %434 = vmatmul.mubr.bf16.gmra.mrb[0].mxu0 %v342
      %v435 = vpop.f32.mrb[0].mxu0
      %v436 = vadd.f32 0.0, %v435
      %v437 = vpop.f32.mrb[0].mxu0
      %v438 = vpop.f32.mrb[0].mxu0
      %v439 = vadd.f32 0.0, %v438
      %v440 = vpop.f32.mrb[0].mxu0
      %441 = vdwg.mxu0
      %v442 = vadd.f32 %v309, %v428
      %v443 = vadd.f32 %v310, %v431
      %v444 = vadd.f32 %v311, %v436
      %v445 = vadd.f32 %v312, %v439
      %446 = vst [vmem:[#allocation2] sm:$0xff] %v442
      %447 = vst [vmem:[#allocation2 + $0x8] sm:$0xff] %v443
      %448 = vst [vmem:[#allocation2 + $0x10] sm:$0xff] %v444
      %449 = vst [vmem:[#allocation2 + $0x18] sm:$0xff] %v445
      // Predicated region
      $region49: #{kegcn_v2_forward.3} parent=43 // pred_check
        %p450 = pneg %p301
      $region50: #{kegcn_v2_forward.3} parent=43 // pred_check_branch
        %452 = sbr.rel (%p450) target = $region52
      $region51: #{kegcn_v2_forward.3} parent=43 // pred_region
        %v453 = vld [vmem:[#allocation2] sm:$0xff]
        %v454 = vld [vmem:[#allocation2 + $0x8] sm:$0xff]
        %v455 = vld [vmem:[#allocation2 + $0x10] sm:$0xff]
        %v456 = vld [vmem:[#allocation2 + $0x18] sm:$0xff]
        %v457 = vpack.c.bf16 %v454, %v453
        %v458 = vpack.c.bf16 %v456, %v455
        %v459 = vld [vmem:[%s2] sm:$0xf]
        %v460 = vld [vmem:[%s2 + $0x4] sm:$0xf]
        %v461 = vld [vmem:[%s2 + $0x8] sm:$0xf]
        %v462 = vld [vmem:[%s2 + $0xc] sm:$0xf]
        %v463 = vld [vmem:[%s2 + $0x10] sm:$0xf]
        %v464 = vld [vmem:[%s2 + $0x14] sm:$0xf]
        %v465 = vld [vmem:[%s2 + $0x18] sm:$0xf]
        %v466 = vld [vmem:[%s2 + $0x1c] sm:$0xf]
        %v467 = vld [vmem:[%s2 + $0x20] sm:$0xf]
        %v468 = vld [vmem:[%s2 + $0x24] sm:$0xf]
        %v469 = vld [vmem:[%s2 + $0x28] sm:$0xf]
        %v470 = vld [vmem:[%s2 + $0x2c] sm:$0xf]
        %v471 = vld [vmem:[%s2 + $0x30] sm:$0xf]
        %v472 = vld [vmem:[%s2 + $0x34] sm:$0xf]
        %v473 = vld [vmem:[%s2 + $0x38] sm:$0xf]
        %v474 = vld [vmem:[%s2 + $0x3c] sm:$0xf]
        %v475 = vld [vmem:[%s3] sm:$0x1]
        %v476 = vlaneseq
        %v477 = vshrl.u32 %v476, 7
        %v478 = vsub.s32 0, %v477
        %v479 = vrot.slane %v475, %v478
        %v496 = vunpack.c.l.b16 %v459
        %v497 = vunpack.c.l.b16 %v460
        %v498 = vunpack.c.l.b16 %v461
        %v499 = vunpack.c.l.b16 %v462
        %v500 = vunpack.c.l.b16 %v463
        %v501 = vunpack.c.l.b16 %v464
        %v502 = vunpack.c.l.b16 %v465
        %v503 = vunpack.c.l.b16 %v466
        %v504 = vunpack.c.l.b16 %v467
        %v505 = vunpack.c.l.b16 %v468
        %v506 = vunpack.c.l.b16 %v469
        %v507 = vunpack.c.l.b16 %v470
        %v508 = vunpack.c.l.b16 %v471
        %v509 = vunpack.c.l.b16 %v472
        %v510 = vunpack.c.l.b16 %v473
        %v511 = vunpack.c.l.b16 %v474
        %v512 = vpack.c.b16 %v497, %v496
        %v513 = vpack.c.b16 %v499, %v498
        %v514 = vpack.c.b16 %v501, %v500
        %v515 = vpack.c.b16 %v503, %v502
        %v516 = vpack.c.b16 %v505, %v504
        %v517 = vpack.c.b16 %v507, %v506
        %v518 = vpack.c.b16 %v509, %v508
        %v519 = vpack.c.b16 %v511, %v510
        %528 = vmatprep.subr.bf16.mxu0 0
        %529 = vmatpush1.bf16.msra.mxu0 %v512
        %530 = vmatprep.subr.bf16.mxu0 0
        %531 = vmatpush1.bf16.msra.mxu0 %v513
        %532 = vmatprep.subr.bf16.mxu0 0
        %533 = vmatpush1.bf16.msra.mxu0 %v514
        %534 = vmatprep.subr.bf16.mxu0 0
        %535 = vmatpush1.bf16.msra.mxu0 %v515
        %536 = vmatprep.subr.bf16.mxu0 0
        %537 = vmatpush1.bf16.msra.mxu0 %v516
        %538 = vmatprep.subr.bf16.mxu0 0
        %539 = vmatpush1.bf16.msra.mxu0 %v517
        %540 = vmatprep.subr.bf16.mxu0 0
        %541 = vmatpush1.bf16.msra.mxu0 %v518
        %542 = vmatprep.subr.bf16.mxu0 0
        %543 = vmatpush1.bf16.msra.mxu0 %v519
        %544 = vmatprep.subr.bf16.mxu0 0
        %545 = vmatpush1.bf16.msra.mxu0 0
        %546 = vmatprep.subr.bf16.mxu0 0
        %547 = vmatpush1.bf16.msra.mxu0 0
        %548 = vmatprep.subr.bf16.mxu0 0
        %549 = vmatpush1.bf16.msra.mxu0 0
        %550 = vmatprep.subr.bf16.mxu0 0
        %551 = vmatpush1.bf16.msra.mxu0 0
        %552 = vmatprep.subr.bf16.mxu0 0
        %553 = vmatpush1.bf16.msra.mxu0 0
        %554 = vmatprep.subr.bf16.mxu0 0
        %555 = vmatpush1.bf16.msra.mxu0 0
        %556 = vmatprep.subr.bf16.mxu0 0
        %557 = vmatpush1.bf16.msra.mxu0 0
        %558 = vmatprep.subr.bf16.mxu0 0
        %559 = vmatpush1.bf16.msra.mxu0 0
        %560 = vmatprep.mubr.bf16.mxu0 0
        %561 = vmatmul.mubr.bf16.gmra.mrb[0].mxu0 %v457
        %v562 = vpop.f32.mrb[0].mxu0
        %v563 = vadd.f32 %v479, %v562
        %v564 = vpop.f32.mrb[0].mxu0
        %v565 = vpop.f32.mrb[0].mxu0
        %v566 = vadd.f32 %v479, %v565
        %v567 = vpop.f32.mrb[0].mxu0
        %568 = vmatprep.mubr.bf16.mxu0 0
        %569 = vmatmul.mubr.bf16.gmra.mrb[0].mxu0 %v458
        %v570 = vpop.f32.mrb[0].mxu0
        %v571 = vadd.f32 %v479, %v570
        %v572 = vpop.f32.mrb[0].mxu0
        %v573 = vpop.f32.mrb[0].mxu0
        %v574 = vadd.f32 %v479, %v573
        %v575 = vpop.f32.mrb[0].mxu0
        %576 = vdwg.mxu0
        %v577 = vlaneseq
        %v578 = vand.u32 %v577, 127
        %vm579 = vcmp.lt.s32.totalorder %v578, 8
        %v580 = vsel %vm579, %v563, -1e+30
        %v581 = vsel %vm579, %v566, -1e+30
        %v582 = vsel %vm579, %v571, -1e+30
        %v583 = vsel %vm579, %v574, -1e+30
        %584 = vmax.xlane.f32.xlu0 %v580
        %v585 = vpop.xlane.xlu0 %584
        %586 = vmax.xlane.f32.xlu0 %v581
        %v587 = vpop.xlane.xlu0 %586
        %588 = vmax.xlane.f32.xlu0 %v582
        %v589 = vpop.xlane.xlu0 %588
        %590 = vmax.xlane.f32.xlu0 %v583
        %v591 = vpop.xlane.xlu0 %590
        %v592 = vsub.f32 %v580, %v585
        %v593 = vsub.f32 %v581, %v587
        %v594 = vsub.f32 %v582, %v589
        %v595 = vsub.f32 %v583, %v591
        %v596 = vmul.f32 %v592, 1.442695
        %v597 = vpow.pop %v596
        %v598 = vmul.f32 %v593, 1.442695
        %v599 = vpow.pop %v598
        %v600 = vmul.f32 %v594, 1.442695
        %v601 = vpow.pop %v600
        %v602 = vmul.f32 %v595, 1.442695
        %v603 = vpow.pop %v602
        %v604 = vsel %vm579, %v597, 0.0
        %v605 = vsel %vm579, %v599, 0.0
        %v606 = vsel %vm579, %v601, 0.0
        %v607 = vsel %vm579, %v603, 0.0
        %608 = vadd.xlane.f32.xlu0 %v604
        %v609 = vpop.xlane.xlu0 %608
        %610 = vadd.xlane.f32.xlu0 %v605
        %v611 = vpop.xlane.xlu0 %610
        %612 = vadd.xlane.f32.xlu0 %v606
        %v613 = vpop.xlane.xlu0 %612
        %614 = vadd.xlane.f32.xlu0 %v607
        %v615 = vpop.xlane.xlu0 %614
        %v616 = vlog2.pop %v609
        %v617 = vmul.f32 %v616, 0.6931472
        %v618 = vlog2.pop %v611
        %v619 = vmul.f32 %v618, 0.6931472
        %v620 = vlog2.pop %v613
        %v621 = vmul.f32 %v620, 0.6931472
        %v622 = vlog2.pop %v615
        %v623 = vmul.f32 %v622, 0.6931472
        %v624 = vsub.f32 %v592, %v617
        %v625 = vsub.f32 %v593, %v619
        %v626 = vsub.f32 %v594, %v621
        %v627 = vsub.f32 %v595, %v623
        %v628 = vsel %vm579, %v624, 0.0
        %v629 = vsel %vm579, %v625, 0.0
        %v630 = vsel %vm579, %v626, 0.0
        %v631 = vsel %vm579, %v627, 0.0
        %v632 = vpack.c.bf16 %v629, %v628
        %v633 = vpack.c.bf16 %v631, %v630
        %v634 = vld [vmem:[%s4] sm:$0xf]
        %v635 = vld [vmem:[%s4 + $0x4] sm:$0xf]
        %v636 = vld [vmem:[%s4 + $0x8] sm:$0xf]
        %v637 = vld [vmem:[%s4 + $0xc] sm:$0xf]
        %v638 = vld [vmem:[%s4 + $0x10] sm:$0xf]
        %v639 = vld [vmem:[%s4 + $0x14] sm:$0xf]
        %v640 = vld [vmem:[%s4 + $0x18] sm:$0xf]
        %v641 = vld [vmem:[%s4 + $0x1c] sm:$0xf]
        %v642 = vld [vmem:[%s4 + $0x20] sm:$0xf]
        %v643 = vld [vmem:[%s4 + $0x24] sm:$0xf]
        %v644 = vld [vmem:[%s4 + $0x28] sm:$0xf]
        %v645 = vld [vmem:[%s4 + $0x2c] sm:$0xf]
        %v646 = vld [vmem:[%s4 + $0x30] sm:$0xf]
        %v647 = vld [vmem:[%s4 + $0x34] sm:$0xf]
        %v648 = vld [vmem:[%s4 + $0x38] sm:$0xf]
        %v649 = vld [vmem:[%s4 + $0x3c] sm:$0xf]
        %v650 = vld [vmem:[%s3 + $0x1] sm:$0x1]
        %v651 = vlaneseq
        %v652 = vshrl.u32 %v651, 7
        %v653 = vsub.s32 0, %v652
        %v654 = vrot.slane %v650, %v653
        %v671 = vunpack.c.l.b16 %v634
        %v672 = vunpack.c.l.b16 %v635
        %v673 = vunpack.c.l.b16 %v636
        %v674 = vunpack.c.l.b16 %v637
        %v675 = vunpack.c.l.b16 %v638
        %v676 = vunpack.c.l.b16 %v639
        %v677 = vunpack.c.l.b16 %v640
        %v678 = vunpack.c.l.b16 %v641
        %v679 = vunpack.c.l.b16 %v642
        %v680 = vunpack.c.l.b16 %v643
        %v681 = vunpack.c.l.b16 %v644
        %v682 = vunpack.c.l.b16 %v645
        %v683 = vunpack.c.l.b16 %v646
        %v684 = vunpack.c.l.b16 %v647
        %v685 = vunpack.c.l.b16 %v648
        %v686 = vunpack.c.l.b16 %v649
        %v687 = vpack.c.b16 %v672, %v671
        %v688 = vpack.c.b16 %v674, %v673
        %v689 = vpack.c.b16 %v676, %v675
        %v690 = vpack.c.b16 %v678, %v677
        %v691 = vpack.c.b16 %v680, %v679
        %v692 = vpack.c.b16 %v682, %v681
        %v693 = vpack.c.b16 %v684, %v683
        %v694 = vpack.c.b16 %v686, %v685
        %703 = vmatprep.subr.bf16.mxu0 0
        %704 = vmatpush1.bf16.msra.mxu0 %v687
        %705 = vmatprep.subr.bf16.mxu0 0
        %706 = vmatpush1.bf16.msra.mxu0 %v688
        %707 = vmatprep.subr.bf16.mxu0 0
        %708 = vmatpush1.bf16.msra.mxu0 %v689
        %709 = vmatprep.subr.bf16.mxu0 0
        %710 = vmatpush1.bf16.msra.mxu0 %v690
        %711 = vmatprep.subr.bf16.mxu0 0
        %712 = vmatpush1.bf16.msra.mxu0 %v691
        %713 = vmatprep.subr.bf16.mxu0 0
        %714 = vmatpush1.bf16.msra.mxu0 %v692
        %715 = vmatprep.subr.bf16.mxu0 0
        %716 = vmatpush1.bf16.msra.mxu0 %v693
        %717 = vmatprep.subr.bf16.mxu0 0
        %718 = vmatpush1.bf16.msra.mxu0 %v694
        %719 = vmatprep.subr.bf16.mxu0 0
        %720 = vmatpush1.bf16.msra.mxu0 0
        %721 = vmatprep.subr.bf16.mxu0 0
        %722 = vmatpush1.bf16.msra.mxu0 0
        %723 = vmatprep.subr.bf16.mxu0 0
        %724 = vmatpush1.bf16.msra.mxu0 0
        %725 = vmatprep.subr.bf16.mxu0 0
        %726 = vmatpush1.bf16.msra.mxu0 0
        %727 = vmatprep.subr.bf16.mxu0 0
        %728 = vmatpush1.bf16.msra.mxu0 0
        %729 = vmatprep.subr.bf16.mxu0 0
        %730 = vmatpush1.bf16.msra.mxu0 0
        %731 = vmatprep.subr.bf16.mxu0 0
        %732 = vmatpush1.bf16.msra.mxu0 0
        %733 = vmatprep.subr.bf16.mxu0 0
        %734 = vmatpush1.bf16.msra.mxu0 0
        %735 = vmatprep.mubr.bf16.mxu0 0
        %736 = vmatmul.mubr.bf16.gmra.mrb[0].mxu0 %v632
        %v737 = vpop.f32.mrb[0].mxu0
        %v738 = vadd.f32 %v654, %v737
        %v739 = vpop.f32.mrb[0].mxu0
        %v740 = vpop.f32.mrb[0].mxu0
        %v741 = vadd.f32 %v654, %v740
        %v742 = vpop.f32.mrb[0].mxu0
        %743 = vmatprep.mubr.bf16.mxu0 0
        %744 = vmatmul.mubr.bf16.gmra.mrb[0].mxu0 %v633
        %v745 = vpop.f32.mrb[0].mxu0
        %v746 = vadd.f32 %v654, %v745
        %v747 = vpop.f32.mrb[0].mxu0
        %v748 = vpop.f32.mrb[0].mxu0
        %v749 = vadd.f32 %v654, %v748
        %v750 = vpop.f32.mrb[0].mxu0
        %751 = vdwg.mxu0
        %v752 = vmax.f32 %v738, 0.0
        %v753 = vmax.f32 %v741, 0.0
        %v754 = vmax.f32 %v746, 0.0
        %v755 = vmax.f32 %v749, 0.0
        %v756 = vpack.c.bf16 %v753, %v752
        %v757 = vpack.c.bf16 %v755, %v754
        %v758 = vld [vmem:[%s5] sm:$0xf]
        %v759 = vld [vmem:[%s5 + $0x4] sm:$0xf]
        %v760 = vld [vmem:[%s5 + $0x8] sm:$0xf]
        %v761 = vld [vmem:[%s5 + $0xc] sm:$0xf]
        %v762 = vld [vmem:[%s5 + $0x10] sm:$0xf]
        %v763 = vld [vmem:[%s5 + $0x14] sm:$0xf]
        %v764 = vld [vmem:[%s5 + $0x18] sm:$0xf]
        %v765 = vld [vmem:[%s5 + $0x1c] sm:$0xf]
        %v766 = vld [vmem:[%s5 + $0x20] sm:$0xf]
        %v767 = vld [vmem:[%s5 + $0x24] sm:$0xf]
        %v768 = vld [vmem:[%s5 + $0x28] sm:$0xf]
        %v769 = vld [vmem:[%s5 + $0x2c] sm:$0xf]
        %v770 = vld [vmem:[%s5 + $0x30] sm:$0xf]
        %v771 = vld [vmem:[%s5 + $0x34] sm:$0xf]
        %v772 = vld [vmem:[%s5 + $0x38] sm:$0xf]
        %v773 = vld [vmem:[%s5 + $0x3c] sm:$0xf]
        %v774 = vld [vmem:[%s3 + $0x2] sm:$0x1]
        %v775 = vlaneseq
        %v776 = vshrl.u32 %v775, 7
        %v777 = vsub.s32 0, %v776
        %v778 = vrot.slane %v774, %v777
        %v795 = vunpack.c.l.b16 %v758
        %v796 = vunpack.c.l.b16 %v759
        %v797 = vunpack.c.l.b16 %v760
        %v798 = vunpack.c.l.b16 %v761
        %v799 = vunpack.c.l.b16 %v762
        %v800 = vunpack.c.l.b16 %v763
        %v801 = vunpack.c.l.b16 %v764
        %v802 = vunpack.c.l.b16 %v765
        %v803 = vunpack.c.l.b16 %v766
        %v804 = vunpack.c.l.b16 %v767
        %v805 = vunpack.c.l.b16 %v768
        %v806 = vunpack.c.l.b16 %v769
        %v807 = vunpack.c.l.b16 %v770
        %v808 = vunpack.c.l.b16 %v771
        %v809 = vunpack.c.l.b16 %v772
        %v810 = vunpack.c.l.b16 %v773
        %v811 = vpack.c.b16 %v796, %v795
        %v812 = vpack.c.b16 %v798, %v797
        %v813 = vpack.c.b16 %v800, %v799
        %v814 = vpack.c.b16 %v802, %v801
        %v815 = vpack.c.b16 %v804, %v803
        %v816 = vpack.c.b16 %v806, %v805
        %v817 = vpack.c.b16 %v808, %v807
        %v818 = vpack.c.b16 %v810, %v809
        %827 = vmatprep.subr.bf16.mxu0 0
        %828 = vmatpush1.bf16.msra.mxu0 %v811
        %829 = vmatprep.subr.bf16.mxu0 0
        %830 = vmatpush1.bf16.msra.mxu0 %v812
        %831 = vmatprep.subr.bf16.mxu0 0
        %832 = vmatpush1.bf16.msra.mxu0 %v813
        %833 = vmatprep.subr.bf16.mxu0 0
        %834 = vmatpush1.bf16.msra.mxu0 %v814
        %835 = vmatprep.subr.bf16.mxu0 0
        %836 = vmatpush1.bf16.msra.mxu0 %v815
        %837 = vmatprep.subr.bf16.mxu0 0
        %838 = vmatpush1.bf16.msra.mxu0 %v816
        %839 = vmatprep.subr.bf16.mxu0 0
        %840 = vmatpush1.bf16.msra.mxu0 %v817
        %841 = vmatprep.subr.bf16.mxu0 0
        %842 = vmatpush1.bf16.msra.mxu0 %v818
        %843 = vmatprep.subr.bf16.mxu0 0
        %844 = vmatpush1.bf16.msra.mxu0 0
        %845 = vmatprep.subr.bf16.mxu0 0
        %846 = vmatpush1.bf16.msra.mxu0 0
        %847 = vmatprep.subr.bf16.mxu0 0
        %848 = vmatpush1.bf16.msra.mxu0 0
        %849 = vmatprep.subr.bf16.mxu0 0
        %850 = vmatpush1.bf16.msra.mxu0 0
        %851 = vmatprep.subr.bf16.mxu0 0
        %852 = vmatpush1.bf16.msra.mxu0 0
        %853 = vmatprep.subr.bf16.mxu0 0
        %854 = vmatpush1.bf16.msra.mxu0 0
        %855 = vmatprep.subr.bf16.mxu0 0
        %856 = vmatpush1.bf16.msra.mxu0 0
        %857 = vmatprep.subr.bf16.mxu0 0
        %858 = vmatpush1.bf16.msra.mxu0 0
        %859 = vmatprep.mubr.bf16.mxu0 0
        %860 = vmatmul.mubr.bf16.gmra.mrb[0].mxu0 %v756
        %v861 = vpop.f32.mrb[0].mxu0
        %v862 = vadd.f32 %v778, %v861
        %v863 = vpop.f32.mrb[0].mxu0
        %v864 = vpop.f32.mrb[0].mxu0
        %v865 = vadd.f32 %v778, %v864
        %v866 = vpop.f32.mrb[0].mxu0
        %867 = vmatprep.mubr.bf16.mxu0 0
        %868 = vmatmul.mubr.bf16.gmra.mrb[0].mxu0 %v757
        %v869 = vpop.f32.mrb[0].mxu0
        %v870 = vadd.f32 %v778, %v869
        %v871 = vpop.f32.mrb[0].mxu0
        %v872 = vpop.f32.mrb[0].mxu0
        %v873 = vadd.f32 %v778, %v872
        %v874 = vpop.f32.mrb[0].mxu0
        %875 = vdwg.mxu0
        %v876 = vadd.f32 %v624, %v862
        %v877 = vadd.f32 %v625, %v865
        %v878 = vadd.f32 %v626, %v870
        %v879 = vadd.f32 %v627, %v873
        %v880 = vsel %vm579, %v876, 0.0
        %v881 = vsel %vm579, %v877, 0.0
        %v882 = vsel %vm579, %v878, 0.0
        %v883 = vsel %vm579, %v879, 0.0
        %884 = vst [vmem:[%s298] sm:$0xff] %v880
        %885 = vst [vmem:[%s298 + $0x8] sm:$0xff] %v881
        %886 = vst [vmem:[%s298 + $0x10] sm:$0xff] %v882
        %887 = vst [vmem:[%s298 + $0x18] sm:$0xff] %v883
      $region52: #{kegcn_v2_forward.3} parent=43 // pred_fallthru
        _
      %s888 = smul.u32 4, %s21
      %p889 = scmp.lt.s32.totalorder %s888, 15
      %s890 = scalar_select %p889, %s888, 15
      %s891 = smul.addr %s890, 8
      %s892 = scalar_lea.vmem %s6, %s891
      // Predicated region
      $region53: #{kegcn_v2_forward.3} parent=43 // pred_check
        %p893 = pneg %p185
      $region54: #{kegcn_v2_forward.3} parent=43 // pred_check_branch
        %895 = sbr.rel (%p893) target = $region56
      $region55: #{kegcn_v2_forward.3} parent=43 // pred_region
        %s896 = smul.u32 4, %s21
      $region56: #{kegcn_v2_forward.3} parent=43 // pred_fallthru
        _
    $region44: #{kegcn_v2_forward.3} parent=5 // pred_fallthru
      _
    %p897 = scmp.le.s32.totalorder 2, %s12
    // Predicated region
    $region57: #{kegcn_v2_forward.3} parent=5 // pred_check
      %p898 = pneg %p897
    $region58: #{kegcn_v2_forward.3} parent=5 // pred_check_branch
      %900 = sbr.rel (%p898) target = $region60
    $region59: #{kegcn_v2_forward.3} parent=5 // pred_region
      %s901 = ssub.s32 %s12, 2
      // Predicated region
      $region61: #{kegcn_v2_forward.3} parent=59 // pred_check
        %p902 = pneg %p191
      $region62: #{kegcn_v2_forward.3} parent=59 // pred_check_branch
        %904 = sbr.rel (%p902) target = $region64
      $region63: #{kegcn_v2_forward.3} parent=59 // pred_region
        %s905 = smul.u32 4, %s23
        %p906 = scmp.lt.s32.totalorder %s905, 15
        %s907 = scalar_select %p906, %s905, 15
        %s908 = smul.addr %s907, 8
        %s909 = scalar_lea.vmem %s6, %s908
      $region64: #{kegcn_v2_forward.3} parent=59 // pred_fallthru
        _
    $region60: #{kegcn_v2_forward.3} parent=5 // pred_fallthru
      _
  $region6: #{kegcn_v2_forward.3} parent=0 // loop_footer
    %s16 = sadd.s32 1, %s12
  $region7: #{kegcn_v2_forward.3} parent=0 // loop_footer_branch
    %11 = sbr.rel target = $region3
  $region8: #{kegcn_v2_forward.3} parent=0 // loop_exit
    _

</llo_original>
